<compile_context>
chip_gen: v7x
topology: tpu7x:2x2x1
jax: 0.10.0
libtpu: 0.0.40
codegen_flags: <defaults>
</compile_context>

<pallas_src>
import jax
import jax.numpy as jnp
from jax.experimental import pallas as pl
from jax.experimental.pallas import tpu as pltpu


def _lrba_kernel(q_ref, k_ref, wq_ref, bq_ref, wk_ref, bk_ref, wv_ref, bv_ref,
                 o_ref):
    # q_ref : (1, tq, d_model)   query tile of batch b
    # k_ref : (1, Nk, d_model)   full keys of batch b (V == K)
    # wq_ref: (d_model, d_k)  bq_ref: (1, d_k)
    # wk_ref: (d_model, d_k)  bk_ref: (1, d_k)
    # wv_ref: (d_model, d_v)  bv_ref: (1, d_v)
    # o_ref : (1, tq, d_v)
    q_in = q_ref[0].astype(jnp.float32)          # (tq, d_model)
    k_in = k_ref[0].astype(jnp.float32)          # (Nk, d_model)

    # Linear projections (weights already transposed to (in, out) and f32).
    q = jnp.dot(q_in, wq_ref[...], preferred_element_type=jnp.float32)
    q = q + bq_ref[...]                          # (tq, d_k)
    k = jnp.dot(k_in, wk_ref[...], preferred_element_type=jnp.float32)
    k = k + bk_ref[...]                          # (Nk, d_k)
    v = jnp.dot(k_in, wv_ref[...], preferred_element_type=jnp.float32)
    v = v + bv_ref[...]                          # (Nk, d_v)

    d_k = wq_ref.shape[1]
    scale = 1.0 / (float(d_k) ** 0.5)

    # scores = q @ k^T / sqrt(d_k)  -- contract over d_k without materializing
    # a transpose.
    s = jax.lax.dot_general(q, k, (((1,), (1,)), ((), ())),
                            preferred_element_type=jnp.float32) * scale
    # numerically-stable softmax; normalize after the PV matmul.
    m = jnp.max(s, axis=-1, keepdims=True)       # (tq, 1)
    p = jnp.exp(s - m)                           # (tq, Nk)
    denom = jnp.sum(p, axis=-1, keepdims=True)   # (tq, 1)

    out = jnp.dot(p, v, preferred_element_type=jnp.float32)   # (tq, d_v)
    out = out / denom
    o_ref[0] = out.astype(o_ref.dtype)


def _pick_q_tile(n_q, target=256):
    """Largest tile <= target that divides n_q and is 8-sublane aligned."""
    if n_q <= target:
        return n_q
    for t in range(target, 7, -8):
        if n_q % t == 0:
            return t
    return n_q


def low_rank_bilinear_attention(Q, K, params, *, tq=None):
    """Q: (B, Nq, d_model), K: (B, Nk, d_model) -> (B, Nq, d_v)."""
    wq, bq, wk, bk, wv, bv = params          # torch layout: W (out, in), b (out,)
    B, Nq, d_model = Q.shape
    _, Nk, _ = K.shape
    d_k = wq.shape[0]
    d_v = wv.shape[0]

    if tq is None:
        tq = _pick_q_tile(Nq)
    assert Nq % tq == 0

    # Pre-transpose / pre-cast resident params once (no per-step casts inside).
    wq_t = jnp.transpose(wq).astype(jnp.float32)          # (d_model, d_k)
    wk_t = jnp.transpose(wk).astype(jnp.float32)          # (d_model, d_k)
    wv_t = jnp.transpose(wv).astype(jnp.float32)          # (d_model, d_v)
    bq2 = bq.reshape(1, d_k).astype(jnp.float32)
    bk2 = bk.reshape(1, d_k).astype(jnp.float32)
    bv2 = bv.reshape(1, d_v).astype(jnp.float32)

    grid = (B, Nq // tq)
    out_shape = jax.ShapeDtypeStruct((B, Nq, d_v), Q.dtype)

    return pl.pallas_call(
        _lrba_kernel,
        out_shape=out_shape,
        grid_spec=pltpu.PrefetchScalarGridSpec(
            num_scalar_prefetch=0,
            grid=grid,
            in_specs=[
                pl.BlockSpec((1, tq, d_model), lambda b, i: (b, i, 0)),   # Q tile
                pl.BlockSpec((1, Nk, d_model), lambda b, i: (b, 0, 0)),   # K (full)
                pl.BlockSpec((d_model, d_k), lambda b, i: (0, 0)),        # WQ^T
                pl.BlockSpec((1, d_k), lambda b, i: (0, 0)),              # bq
                pl.BlockSpec((d_model, d_k), lambda b, i: (0, 0)),        # WK^T
                pl.BlockSpec((1, d_k), lambda b, i: (0, 0)),              # bk
                pl.BlockSpec((d_model, d_v), lambda b, i: (0, 0)),        # WV^T
                pl.BlockSpec((1, d_v), lambda b, i: (0, 0)),              # bv
            ],
            out_specs=pl.BlockSpec((1, tq, d_v), lambda b, i: (b, i, 0)),
        ),
        compiler_params=pltpu.CompilerParams(
            dimension_semantics=("parallel", "parallel")),
    )(Q, K, wq_t, bq2, wk_t, bk2, wv_t, bv2)


def reference_forward(Q, K, params):
    """Pure-JAX reference of the torch module (for correctness check)."""
    wq, bq, wk, bk, wv, bv = params
    Qf = Q.astype(jnp.float32)
    Kf = K.astype(jnp.float32)
    q = Qf @ wq.T.astype(jnp.float32) + bq.astype(jnp.float32)
    k = Kf @ wk.T.astype(jnp.float32) + bk.astype(jnp.float32)
    v = Kf @ wv.T.astype(jnp.float32) + bv.astype(jnp.float32)
    s = jnp.einsum("bqd,bkd->bqk", q, k) / (q.shape[-1] ** 0.5)
    p = jax.nn.softmax(s, axis=-1)
    out = jnp.einsum("bqk,bkv->bqv", p, v)
    return out.astype(Q.dtype)


if __name__ == "__main__":
    # Module defaults: d_model=128, d_k=64, d_v=256.  Small seq lengths.
    B, Nq, Nk = 2, 128, 128
    d_model, d_k, d_v = 128, 64, 256

    key = jax.random.PRNGKey(0)
    kq, kk, k1, k2, k3, k4, k5, k6 = jax.random.split(key, 8)

    Q = jax.random.normal(kq, (B, Nq, d_model), dtype=jnp.float32)
    K = jax.random.normal(kk, (B, Nk, d_model), dtype=jnp.float32)

    # nn.Linear-style params (weight: (out, in), bias: (out,)).
    wq = jax.random.normal(k1, (d_k, d_model), dtype=jnp.float32) / jnp.sqrt(d_model)
    bq = jax.random.normal(k2, (d_k,), dtype=jnp.float32) * 0.01
    wk = jax.random.normal(k3, (d_k, d_model), dtype=jnp.float32) / jnp.sqrt(d_model)
    bk = jax.random.normal(k4, (d_k,), dtype=jnp.float32) * 0.01
    wv = jax.random.normal(k5, (d_v, d_model), dtype=jnp.float32) / jnp.sqrt(d_model)
    bv = jax.random.normal(k6, (d_v,), dtype=jnp.float32) * 0.01

    params = (wq, bq, wk, bk, wv, bv)

    out = low_rank_bilinear_attention(Q, K, params)
    out = jax.block_until_ready(out)

    ref = jax.block_until_ready(reference_forward(Q, K, params))

    assert out.shape == (B, Nq, d_v), out.shape
    assert jnp.allclose(out, ref, atol=1e-4, rtol=1e-4), "mismatch vs reference"

    print("KERNEL_OK")
</pallas_src>

<mosaic_0001>
module attributes {stable_mosaic.version = 11 : i64} {
  func.func @_lrba_kernel(%arg0: i32, %arg1: i32, %arg2: memref<1x128x128xf32, #tpu.memory_space<vmem>>, %arg3: memref<1x128x128xf32, #tpu.memory_space<vmem>>, %arg4: memref<128x64xf32, #tpu.memory_space<vmem>>, %arg5: memref<1x64xf32, #tpu.memory_space<vmem>>, %arg6: memref<128x64xf32, #tpu.memory_space<vmem>>, %arg7: memref<1x64xf32, #tpu.memory_space<vmem>>, %arg8: memref<128x256xf32, #tpu.memory_space<vmem>>, %arg9: memref<1x256xf32, #tpu.memory_space<vmem>>, %arg10: memref<1x128x256xf32, #tpu.memory_space<vmem>>) attributes {dimension_semantics = [#tpu.dimension_semantics<parallel>, #tpu.dimension_semantics<parallel>], iteration_bounds = array<i64: 2, 1>, scalar_prefetch = 0 : i64, scratch_operands = 0 : i64, tpu.core_type = #tpu.core_type<tc>, window_params = [{transform_indices = @transform_0, window_bounds = array<i64: 1, 128, 128>}, {transform_indices = @transform_1, window_bounds = array<i64: 1, 128, 128>}, {pipeline_mode = #tpu.pipeline_mode<synchronous>, transform_indices = @transform_2, window_bounds = array<i64: 128, 64>}, {pipeline_mode = #tpu.pipeline_mode<synchronous>, transform_indices = @transform_3, window_bounds = array<i64: 1, 64>}, {pipeline_mode = #tpu.pipeline_mode<synchronous>, transform_indices = @transform_4, window_bounds = array<i64: 128, 64>}, {pipeline_mode = #tpu.pipeline_mode<synchronous>, transform_indices = @transform_5, window_bounds = array<i64: 1, 64>}, {pipeline_mode = #tpu.pipeline_mode<synchronous>, transform_indices = @transform_6, window_bounds = array<i64: 128, 256>}, {pipeline_mode = #tpu.pipeline_mode<synchronous>, transform_indices = @transform_7, window_bounds = array<i64: 1, 256>}, {transform_indices = @transform_8, window_bounds = array<i64: 1, 128, 256>}]} {
    %c0 = arith.constant 0 : index
    %c0_0 = arith.constant 0 : index
    %c0_1 = arith.constant 0 : index
    %0 = vector.load %arg2[%c0, %c0_0, %c0_1] : memref<1x128x128xf32, #tpu.memory_space<vmem>>, vector<1x128x128xf32>
    %1 = vector.shape_cast %0 : vector<1x128x128xf32> to vector<128x128xf32>
    %c0_2 = arith.constant 0 : index
    %c0_3 = arith.constant 0 : index
    %c0_4 = arith.constant 0 : index
    %2 = vector.load %arg3[%c0_2, %c0_3, %c0_4] : memref<1x128x128xf32, #tpu.memory_space<vmem>>, vector<1x128x128xf32>
    %3 = vector.shape_cast %2 : vector<1x128x128xf32> to vector<128x128xf32>
    %c0_5 = arith.constant 0 : index
    %c0_6 = arith.constant 0 : index
    %4 = vector.load %arg4[%c0_5, %c0_6] : memref<128x64xf32, #tpu.memory_space<vmem>>, vector<128x64xf32>
    %cst = arith.constant dense<0.000000e+00> : vector<128x64xf32>
    %5 = tpu.matmul %1, %4, %cst {dimension_numbers = #tpu.dot_dimension_numbers<[1], [0], [0], [1], [0, 0, 1, 1], [], []>} : vector<128x128xf32>, vector<128x64xf32>, vector<128x64xf32> -> vector<128x64xf32>
    %c0_7 = arith.constant 0 : index
    %c0_8 = arith.constant 0 : index
    %6 = vector.load %arg5[%c0_7, %c0_8] : memref<1x64xf32, #tpu.memory_space<vmem>>, vector<1x64xf32>
    %7 = vector.broadcast %6 : vector<1x64xf32> to vector<128x64xf32>
    %8 = arith.addf %5, %7 : vector<128x64xf32>
    %c0_9 = arith.constant 0 : index
    %c0_10 = arith.constant 0 : index
    %9 = vector.load %arg6[%c0_9, %c0_10] : memref<128x64xf32, #tpu.memory_space<vmem>>, vector<128x64xf32>
    %cst_11 = arith.constant dense<0.000000e+00> : vector<128x64xf32>
    %10 = tpu.matmul %3, %9, %cst_11 {dimension_numbers = #tpu.dot_dimension_numbers<[1], [0], [0], [1], [0, 0, 1, 1], [], []>} : vector<128x128xf32>, vector<128x64xf32>, vector<128x64xf32> -> vector<128x64xf32>
    %c0_12 = arith.constant 0 : index
    %c0_13 = arith.constant 0 : index
    %11 = vector.load %arg7[%c0_12, %c0_13] : memref<1x64xf32, #tpu.memory_space<vmem>>, vector<1x64xf32>
    %12 = vector.broadcast %11 : vector<1x64xf32> to vector<128x64xf32>
    %13 = arith.addf %10, %12 : vector<128x64xf32>
    %c0_14 = arith.constant 0 : index
    %c0_15 = arith.constant 0 : index
    %14 = vector.load %arg8[%c0_14, %c0_15] : memref<128x256xf32, #tpu.memory_space<vmem>>, vector<128x256xf32>
    %cst_16 = arith.constant dense<0.000000e+00> : vector<128x256xf32>
    %15 = tpu.matmul %3, %14, %cst_16 {dimension_numbers = #tpu.dot_dimension_numbers<[1], [0], [0], [1], [0, 0, 1, 1], [], []>} : vector<128x128xf32>, vector<128x256xf32>, vector<128x256xf32> -> vector<128x256xf32>
    %c0_17 = arith.constant 0 : index
    %c0_18 = arith.constant 0 : index
    %16 = vector.load %arg9[%c0_17, %c0_18] : memref<1x256xf32, #tpu.memory_space<vmem>>, vector<1x256xf32>
    %17 = vector.broadcast %16 : vector<1x256xf32> to vector<128x256xf32>
    %18 = arith.addf %15, %17 : vector<128x256xf32>
    %cst_19 = arith.constant dense<0.000000e+00> : vector<128x128xf32>
    %19 = tpu.matmul %8, %13, %cst_19 {dimension_numbers = #tpu.dot_dimension_numbers<[1], [1], [0], [0], [0, 0, 1, 0], [], []>} : vector<128x64xf32>, vector<128x64xf32>, vector<128x128xf32> -> vector<128x128xf32>
    %cst_20 = arith.constant 1.250000e-01 : f32
    %20 = vector.broadcast %cst_20 : f32 to vector<128x128xf32>
    %21 = arith.mulf %19, %20 : vector<128x128xf32>
    %cst_21 = arith.constant dense<0xFF800000> : vector<128xf32>
    %22 = vector.multi_reduction <maximumf>, %21, %cst_21 [1] : vector<128x128xf32> to vector<128xf32>
    %23 = vector.shape_cast %22 : vector<128xf32> to vector<128x1xf32>
    %24 = vector.broadcast %23 : vector<128x1xf32> to vector<128x128xf32>
    %25 = arith.subf %21, %24 : vector<128x128xf32>
    %26 = math.exp %25 : vector<128x128xf32>
    %cst_22 = arith.constant dense<0.000000e+00> : vector<128xf32>
    %27 = vector.multi_reduction <add>, %26, %cst_22 [1] : vector<128x128xf32> to vector<128xf32>
    %28 = vector.shape_cast %27 : vector<128xf32> to vector<128x1xf32>
    %cst_23 = arith.constant dense<0.000000e+00> : vector<128x256xf32>
    %29 = tpu.matmul %26, %18, %cst_23 {dimension_numbers = #tpu.dot_dimension_numbers<[1], [0], [0], [1], [0, 0, 1, 1], [], []>} : vector<128x128xf32>, vector<128x256xf32>, vector<128x256xf32> -> vector<128x256xf32>
    %30 = vector.broadcast %28 : vector<128x1xf32> to vector<128x256xf32>
    %31 = arith.divf %29, %30 : vector<128x256xf32>
    %c0_24 = arith.constant 0 : index
    %c0_25 = arith.constant 0 : index
    %c0_26 = arith.constant 0 : index
    %32 = vector.load %arg10[%c0_24, %c0_25, %c0_26] : memref<1x128x256xf32, #tpu.memory_space<vmem>>, vector<1x128x256xf32>
    %33 = vector.shape_cast %32 : vector<1x128x256xf32> to vector<128x256xf32>
    %34 = vector.shape_cast %31 : vector<128x256xf32> to vector<1x128x256xf32>
    tpu.vector_store %arg10[%c0_24, %c0_25, %c0_26], %34 {strides = array<i32>} : memref<1x128x256xf32, #tpu.memory_space<vmem>>, vector<1x128x256xf32>,
    return
  }
  func.func @transform_0(%arg0: i32, %arg1: i32) -> (i32, i32, i32) {
    %c0_i32 = arith.constant 0 : i32
    %c0_i32_0 = arith.constant 0 : i32
    return %arg0, %arg1, %c0_i32 : i32, i32, i32
  }
  func.func @transform_1(%arg0: i32, %arg1: i32) -> (i32, i32, i32) {
    %c0_i32 = arith.constant 0 : i32
    %c0_i32_0 = arith.constant 0 : i32
    %c0_i32_1 = arith.constant 0 : i32
    return %arg0, %c0_i32, %c0_i32_0 : i32, i32, i32
  }
  func.func @transform_2(%arg0: i32, %arg1: i32) -> (i32, i32) {
    %c0_i32 = arith.constant 0 : i32
    %c0_i32_0 = arith.constant 0 : i32
    %c0_i32_1 = arith.constant 0 : i32
    return %c0_i32, %c0_i32_0 : i32, i32
  }
  func.func @transform_3(%arg0: i32, %arg1: i32) -> (i32, i32) {
    %c0_i32 = arith.constant 0 : i32
    %c0_i32_0 = arith.constant 0 : i32
    %c0_i32_1 = arith.constant 0 : i32
    return %c0_i32, %c0_i32_0 : i32, i32
  }
  func.func @transform_4(%arg0: i32, %arg1: i32) -> (i32, i32) {
    %c0_i32 = arith.constant 0 : i32
    %c0_i32_0 = arith.constant 0 : i32
    %c0_i32_1 = arith.constant 0 : i32
    return %c0_i32, %c0_i32_0 : i32, i32
  }
  func.func @transform_5(%arg0: i32, %arg1: i32) -> (i32, i32) {
    %c0_i32 = arith.constant 0 : i32
    %c0_i32_0 = arith.constant 0 : i32
    %c0_i32_1 = arith.constant 0 : i32
    return %c0_i32, %c0_i32_0 : i32, i32
  }
  func.func @transform_6(%arg0: i32, %arg1: i32) -> (i32, i32) {
    %c0_i32 = arith.constant 0 : i32
    %c0_i32_0 = arith.constant 0 : i32
    %c0_i32_1 = arith.constant 0 : i32
    return %c0_i32, %c0_i32_0 : i32, i32
  }
  func.func @transform_7(%arg0: i32, %arg1: i32) -> (i32, i32) {
    %c0_i32 = arith.constant 0 : i32
    %c0_i32_0 = arith.constant 0 : i32
    %c0_i32_1 = arith.constant 0 : i32
    return %c0_i32, %c0_i32_0 : i32, i32
  }
  func.func @transform_8(%arg0: i32, %arg1: i32) -> (i32, i32, i32) {
    %c0_i32 = arith.constant 0 : i32
    %c0_i32_0 = arith.constant 0 : i32
    return %arg0, %arg1, %c0_i32 : i32, i32, i32
  }
}

</mosaic_0001>

<llo_original>
// kernel: tpu_custom_call.1
$region0: #{tpu_custom_call.1}
  #allocation0 [shape = 'u32[]', space=smem, size = 0x4, offset = 0x4, fixed_abs, tag = 'smem constant byte address 0x4 - core index']
  #allocation1 [shape = 'u32[144,128]{1,0:T(1,128)}', space=vmem, size = 0x12000, scoped, tag = 'internal scratch']
  %s0 = inlined_call_operand.vmem [shape: f32[2,128,128], index: 0, kind: input, shape index: {}]
  %s1 = inlined_call_operand.hbm [shape: f32[2,128,128], index: 1, kind: input, shape index: {}]
  %s2 = inlined_call_operand.vmem [shape: f32[128,64], index: 2, kind: input, shape index: {}]
  %s3 = inlined_call_operand.vmem [shape: f32[1,64], index: 3, kind: input, shape index: {}]
  %s4 = inlined_call_operand.vmem [shape: f32[128,64], index: 4, kind: input, shape index: {}]
  %s5 = inlined_call_operand.vmem [shape: f32[1,64], index: 5, kind: input, shape index: {}]
  %s6 = inlined_call_operand.hbm [shape: f32[128,256], index: 6, kind: input, shape index: {}]
  %s7 = inlined_call_operand.vmem [shape: f32[1,256], index: 7, kind: input, shape index: {}]
  %s8 = inlined_call_operand.hbm [shape: f32[2,128,256], index: 8, kind: output, shape index: {}]
  %s9 = sld [smem:[#allocation0]]
  $region73: #{tpu_custom_call.1} parent=0
    _
  %s11 = ssub.s32 1, %s9
  %s12 = scalar_select 0, %s11, %s9
  $region1: #{tpu_custom_call.1} parent=0
    #allocation2 [shape = 'u8[131072]{0}', space=vmem, size = 0x20000, scoped, tag = 'input window, operand 1']
    #allocation3 [shape = 's32[2]{0}', space=sflag, size = 0x8, scoped, tag = 'scoped memory for tpu_custom_call.1']
    #allocation4 [shape = 's32[2]{0}', space=sflag, size = 0x8, scoped, tag = 'scoped memory for tpu_custom_call.1']
    #allocation5 [shape = 'u8[131072]{0}', space=vmem, size = 0x20000, scoped, tag = 'input window, operand 6, single buffered']
    #allocation6 [shape = 's32[1]{0}', space=sflag, size = 0x4, scoped, tag = 'scoped memory for tpu_custom_call.1']
    #allocation7 [shape = 'u8[262144]{0}', space=vmem, size = 0x40000, scoped, tag = 'output window, operand 0']
    %13 = vsyncpa [#allocation3], 0
    %s14 = scalar_lea.sflag [#allocation3], 1
    %15 = vsyncpa %s14, 0
    %16 = vsyncpa [#allocation6], 0
    %17 = vsyncpa [#allocation4], 0
    %s18 = scalar_lea.sflag [#allocation4], 1
    %19 = vsyncpa %s18, 0
    loop: start=0, step=1, limit=4
    $region2: #{tpu_custom_call.1} parent=1 // loop_pre_header
      _
    $region3: #{tpu_custom_call.1} parent=1 // loop_header
      %s21 = sphi 0, %s25
      %p22 = scmp.ge.s32.totalorder %s21, 4
      %s28 = sphi 0, %s40
      %s29 = sphi 0, %s36
      %s30 = sphi 0, %s28
      %s31 = sphi 0, %s29
      %s32 = sphi 0, %s30
      %s33 = sphi 0, %s31
      %s45 = sphi 0, %s47
      %s48 = sphi 0, %s45
      %s49 = sphi 0, %s48
      %s65 = sphi 0, %s49
      %s71 = sphi 0, %s73
      %s74 = sphi 0, %s71
      %s75 = sphi 0, %s74
      %s91 = sphi 0, %s75
      %s95 = sphi 0, %s95
      %s97 = sphi 0, %s95
      %s98 = sphi 0, %s97
      %s112 = sphi 0, %s98
      %s116 = sphi 0, %s116
      %s118 = sphi 0, %s116
      %s119 = sphi 0, %s118
      %s133 = sphi 0, %s119
      %s137 = sphi 0, %s137
      %s139 = sphi 0, %s137
      %s140 = sphi 0, %s139
      %s154 = sphi 0, %s140
      %s158 = sphi 0, %s158
      %s160 = sphi 0, %s158
      %s161 = sphi 0, %s160
      %s175 = sphi 0, %s161
      %s179 = sphi 0, %s179
      %s181 = sphi 0, %s179
      %s182 = sphi 0, %s181
      %s196 = sphi 0, %s182
      %s200 = sphi 0, %s200
      %s202 = sphi 0, %s200
      %s203 = sphi 0, %s202
      %s217 = sphi 0, %s203
      %s225 = sphi 0, %s227
      %s228 = sphi 0, %s225
      %s229 = sphi 0, %s228
      %s245 = sphi 0, %s229
    $region4: #{tpu_custom_call.1} parent=1 // loop_header_branch
      %24 = sbr.rel (%p22) target = $region8
    $region5: #{tpu_custom_call.1} parent=1 // loop_body
      %s26 = ssub.s32 %s21, 1
      %s27 = ssub.s32 %s21, 2
      %s34 = sadd.s32 1, %s29
      %p35 = scmp.ge.s32.totalorder %s34, 1
      %s36 = scalar_select %p35, 0, %s34
      %s37 = sadd.s32 1, %s28
      %s38 = scalar_select %p35, %s37, %s28
      %p39 = scmp.ge.s32.totalorder %s38, 2
      %s40 = scalar_select %p39, 0, %s38
      %s41 = ssub.s32 %s28, %s40
      %s42 = ssub.s32 %s29, %s36
      %s43 = sor.u32 %s41, %s42
      %p44 = scmp.eq.s32.totalorder %s43, 0
      %s46 = sadd.s32 %s45, 1
      %s47 = scalar_select %p44, %s45, %s46
      %p50 = pneg %p44
      %p51 = scmp.eq.s32.totalorder %s21, 1
      %p52 = por %p50, %p51
      %p53 = scmp.ne.s32.totalorder %s45, %s48
      %p54 = scmp.eq.s32.totalorder %s21, 0
      %p55 = por %p53, %p54
      %p56 = scmp.ne.s32.totalorder %s45, %s48
      %p57 = scmp.eq.s32.totalorder %s26, 1
      %p58 = por %p56, %p57
      %p59 = scmp.ne.s32.totalorder %s48, %s49
      %p60 = scmp.eq.s32.totalorder %s26, 0
      %p61 = por %p59, %p60
      %p62 = scmp.ne.s32.totalorder %s48, %s49
      %p63 = scmp.eq.s32.totalorder %s27, 1
      %p64 = por %p62, %p63
      %p66 = scmp.ne.s32.totalorder %s49, %s65
      %p67 = scmp.eq.s32.totalorder %s27, 0
      %p68 = por %p66, %p67
      %s69 = ssub.s32 %s28, %s40
      %p70 = scmp.eq.s32.totalorder %s69, 0
      %s72 = sadd.s32 %s71, 1
      %s73 = scalar_select %p70, %s71, %s72
      %p76 = pneg %p70
      %p77 = scmp.eq.s32.totalorder %s21, 1
      %p78 = por %p76, %p77
      %p79 = scmp.ne.s32.totalorder %s71, %s74
      %p80 = scmp.eq.s32.totalorder %s21, 0
      %p81 = por %p79, %p80
      %p82 = scmp.ne.s32.totalorder %s71, %s74
      %p83 = scmp.eq.s32.totalorder %s26, 1
      %p84 = por %p82, %p83
      %p85 = scmp.ne.s32.totalorder %s74, %s75
      %p86 = scmp.eq.s32.totalorder %s26, 0
      %p87 = por %p85, %p86
      %p88 = scmp.ne.s32.totalorder %s74, %s75
      %p89 = scmp.eq.s32.totalorder %s27, 1
      %p90 = por %p88, %p89
      %p92 = scmp.ne.s32.totalorder %s75, %s91
      %p93 = scmp.eq.s32.totalorder %s27, 0
      %p94 = por %p92, %p93
      %s96 = sadd.s32 %s95, 1
      %p99 = scmp.eq.s32.totalorder %s21, 1
      %p100 = scmp.ne.s32.totalorder %s95, %s97
      %p101 = scmp.eq.s32.totalorder %s21, 0
      %p102 = por %p100, %p101
      %p103 = scmp.ne.s32.totalorder %s95, %s97
      %p104 = scmp.eq.s32.totalorder %s26, 1
      %p105 = por %p103, %p104
      %p106 = scmp.ne.s32.totalorder %s97, %s98
      %p107 = scmp.eq.s32.totalorder %s26, 0
      %p108 = por %p106, %p107
      %p109 = scmp.ne.s32.totalorder %s97, %s98
      %p110 = scmp.eq.s32.totalorder %s27, 1
      %p111 = por %p109, %p110
      %p113 = scmp.ne.s32.totalorder %s98, %s112
      %p114 = scmp.eq.s32.totalorder %s27, 0
      %p115 = por %p113, %p114
      %s117 = sadd.s32 %s116, 1
      %p120 = scmp.eq.s32.totalorder %s21, 1
      %p121 = scmp.ne.s32.totalorder %s116, %s118
      %p122 = scmp.eq.s32.totalorder %s21, 0
      %p123 = por %p121, %p122
      %p124 = scmp.ne.s32.totalorder %s116, %s118
      %p125 = scmp.eq.s32.totalorder %s26, 1
      %p126 = por %p124, %p125
      %p127 = scmp.ne.s32.totalorder %s118, %s119
      %p128 = scmp.eq.s32.totalorder %s26, 0
      %p129 = por %p127, %p128
      %p130 = scmp.ne.s32.totalorder %s118, %s119
      %p131 = scmp.eq.s32.totalorder %s27, 1
      %p132 = por %p130, %p131
      %p134 = scmp.ne.s32.totalorder %s119, %s133
      %p135 = scmp.eq.s32.totalorder %s27, 0
      %p136 = por %p134, %p135
      %s138 = sadd.s32 %s137, 1
      %p141 = scmp.eq.s32.totalorder %s21, 1
      %p142 = scmp.ne.s32.totalorder %s137, %s139
      %p143 = scmp.eq.s32.totalorder %s21, 0
      %p144 = por %p142, %p143
      %p145 = scmp.ne.s32.totalorder %s137, %s139
      %p146 = scmp.eq.s32.totalorder %s26, 1
      %p147 = por %p145, %p146
      %p148 = scmp.ne.s32.totalorder %s139, %s140
      %p149 = scmp.eq.s32.totalorder %s26, 0
      %p150 = por %p148, %p149
      %p151 = scmp.ne.s32.totalorder %s139, %s140
      %p152 = scmp.eq.s32.totalorder %s27, 1
      %p153 = por %p151, %p152
      %p155 = scmp.ne.s32.totalorder %s140, %s154
      %p156 = scmp.eq.s32.totalorder %s27, 0
      %p157 = por %p155, %p156
      %s159 = sadd.s32 %s158, 1
      %p162 = scmp.eq.s32.totalorder %s21, 1
      %p163 = scmp.ne.s32.totalorder %s158, %s160
      %p164 = scmp.eq.s32.totalorder %s21, 0
      %p165 = por %p163, %p164
      %p166 = scmp.ne.s32.totalorder %s158, %s160
      %p167 = scmp.eq.s32.totalorder %s26, 1
      %p168 = por %p166, %p167
      %p169 = scmp.ne.s32.totalorder %s160, %s161
      %p170 = scmp.eq.s32.totalorder %s26, 0
      %p171 = por %p169, %p170
      %p172 = scmp.ne.s32.totalorder %s160, %s161
      %p173 = scmp.eq.s32.totalorder %s27, 1
      %p174 = por %p172, %p173
      %p176 = scmp.ne.s32.totalorder %s161, %s175
      %p177 = scmp.eq.s32.totalorder %s27, 0
      %p178 = por %p176, %p177
      %s180 = sadd.s32 %s179, 1
      %p183 = scmp.eq.s32.totalorder %s21, 1
      %p184 = scmp.ne.s32.totalorder %s179, %s181
      %p185 = scmp.eq.s32.totalorder %s21, 0
      %p186 = por %p184, %p185
      %p187 = scmp.ne.s32.totalorder %s179, %s181
      %p188 = scmp.eq.s32.totalorder %s26, 1
      %p189 = por %p187, %p188
      %p190 = scmp.ne.s32.totalorder %s181, %s182
      %p191 = scmp.eq.s32.totalorder %s26, 0
      %p192 = por %p190, %p191
      %p193 = scmp.ne.s32.totalorder %s181, %s182
      %p194 = scmp.eq.s32.totalorder %s27, 1
      %p195 = por %p193, %p194
      %p197 = scmp.ne.s32.totalorder %s182, %s196
      %p198 = scmp.eq.s32.totalorder %s27, 0
      %p199 = por %p197, %p198
      %s201 = sadd.s32 %s200, 1
      %p204 = scmp.eq.s32.totalorder %s21, 1
      %p205 = scmp.ne.s32.totalorder %s200, %s202
      %p206 = scmp.eq.s32.totalorder %s21, 0
      %p207 = por %p205, %p206
      %p208 = scmp.ne.s32.totalorder %s200, %s202
      %p209 = scmp.eq.s32.totalorder %s26, 1
      %p210 = por %p208, %p209
      %p211 = scmp.ne.s32.totalorder %s202, %s203
      %p212 = scmp.eq.s32.totalorder %s26, 0
      %p213 = por %p211, %p212
      %p214 = scmp.ne.s32.totalorder %s202, %s203
      %p215 = scmp.eq.s32.totalorder %s27, 1
      %p216 = por %p214, %p215
      %p218 = scmp.ne.s32.totalorder %s203, %s217
      %p219 = scmp.eq.s32.totalorder %s27, 0
      %p220 = por %p218, %p219
      %s221 = ssub.s32 %s28, %s40
      %s222 = ssub.s32 %s29, %s36
      %s223 = sor.u32 %s221, %s222
      %p224 = scmp.eq.s32.totalorder %s223, 0
      %s226 = sadd.s32 %s225, 1
      %s227 = scalar_select %p224, %s225, %s226
      %p230 = pneg %p224
      %p231 = scmp.eq.s32.totalorder %s21, 1
      %p232 = por %p230, %p231
      %p233 = scmp.ne.s32.totalorder %s225, %s228
      %p234 = scmp.eq.s32.totalorder %s21, 0
      %p235 = por %p233, %p234
      %p236 = scmp.ne.s32.totalorder %s225, %s228
      %p237 = scmp.eq.s32.totalorder %s26, 1
      %p238 = por %p236, %p237
      %p239 = scmp.ne.s32.totalorder %s228, %s229
      %p240 = scmp.eq.s32.totalorder %s26, 0
      %p241 = por %p239, %p240
      %p242 = scmp.ne.s32.totalorder %s228, %s229
      %p243 = scmp.eq.s32.totalorder %s27, 1
      %p244 = por %p242, %p243
      %p246 = scmp.ne.s32.totalorder %s229, %s245
      %p247 = scmp.eq.s32.totalorder %s27, 0
      %p248 = por %p246, %p247
      %p249 = scmp.le.s32.totalorder 1, %s21
      %p250 = scmp.lt.s32.totalorder %s21, 3
      %p251 = pnand %p249, %p250
      %p252 = pneg %p251
      // Predicated region
      $region9: #{tpu_custom_call.1} parent=5 // pred_check
        _
      $region10: #{tpu_custom_call.1} parent=5 // pred_check_branch
        %254 = sbr.rel (%p251) target = $region12
      $region11: #{tpu_custom_call.1} parent=5 // pred_region
        %s255 = ssub.s32 %s21, 1
        // Predicated region
        $region13: #{tpu_custom_call.1} parent=11 // pred_check
          %p256 = pneg %p108
        $region14: #{tpu_custom_call.1} parent=11 // pred_check_branch
          %258 = sbr.rel (%p256) target = $region16
        $region15: #{tpu_custom_call.1} parent=11 // pred_region
          _
        $region16: #{tpu_custom_call.1} parent=11 // pred_fallthru
          _
        // Predicated region
        $region17: #{tpu_custom_call.1} parent=11 // pred_check
          %p259 = pneg %p129
        $region18: #{tpu_custom_call.1} parent=11 // pred_check_branch
          %261 = sbr.rel (%p259) target = $region20
        $region19: #{tpu_custom_call.1} parent=11 // pred_region
          _
        $region20: #{tpu_custom_call.1} parent=11 // pred_fallthru
          _
        // Predicated region
        $region21: #{tpu_custom_call.1} parent=11 // pred_check
          %p262 = pneg %p150
        $region22: #{tpu_custom_call.1} parent=11 // pred_check_branch
          %264 = sbr.rel (%p262) target = $region24
        $region23: #{tpu_custom_call.1} parent=11 // pred_region
          _
        $region24: #{tpu_custom_call.1} parent=11 // pred_fallthru
          _
        // Predicated region
        $region25: #{tpu_custom_call.1} parent=11 // pred_check
          %p265 = pneg %p171
        $region26: #{tpu_custom_call.1} parent=11 // pred_check_branch
          %267 = sbr.rel (%p265) target = $region28
        $region27: #{tpu_custom_call.1} parent=11 // pred_region
          _
        $region28: #{tpu_custom_call.1} parent=11 // pred_fallthru
          _
        // Predicated region
        $region29: #{tpu_custom_call.1} parent=11 // pred_check
          %p268 = pneg %p192
        $region30: #{tpu_custom_call.1} parent=11 // pred_check_branch
          %270 = sbr.rel (%p268) target = $region32
        $region31: #{tpu_custom_call.1} parent=11 // pred_region
          %s272 = ssub.s32 4096, 4096
          %273 = vsyncadd [#allocation6], %s272
          %s274 = sshll.u32 [#allocation5], 4
          %s275 = int_to_ptr.vmem [resolvable:$true] %s274
          %280 = dma.hbm_to_vmem [thread:$0]  %s6, 4096, %s275, [#allocation6], 256, 256, 16
        $region32: #{tpu_custom_call.1} parent=11 // pred_fallthru
          _
        // Predicated region
        $region33: #{tpu_custom_call.1} parent=11 // pred_check
          %p281 = pneg %p213
        $region34: #{tpu_custom_call.1} parent=11 // pred_check_branch
          %283 = sbr.rel (%p281) target = $region36
        $region35: #{tpu_custom_call.1} parent=11 // pred_region
          _
        $region36: #{tpu_custom_call.1} parent=11 // pred_fallthru
          _
      $region12: #{tpu_custom_call.1} parent=5 // pred_fallthru
        _
      %p284 = scmp.lt.s32.totalorder %s21, 2
      // Predicated region
      $region37: #{tpu_custom_call.1} parent=5 // pred_check
        %p285 = pneg %p284
      $region38: #{tpu_custom_call.1} parent=5 // pred_check_branch
        %287 = sbr.rel (%p285) target = $region40
      $region39: #{tpu_custom_call.1} parent=5 // pred_region
        // Predicated region
        $region41: #{tpu_custom_call.1} parent=39 // pred_check
          %p288 = pneg %p55
        $region42: #{tpu_custom_call.1} parent=39 // pred_check_branch
          %290 = sbr.rel (%p288) target = $region44
        $region43: #{tpu_custom_call.1} parent=39 // pred_region
          %s291 = smul.u32 16, %s29
          %p292 = scmp.lt.s32.totalorder %s28, 1
          %s293 = scalar_select %p292, %s28, 1
          %p294 = scmp.lt.s32.totalorder %s291, 15
          %s295 = scalar_select %p294, %s291, 15
          %s296 = smul.addr %s293, 16
          %s297 = sadd.s32 %s295, %s296
          %s298 = smul.addr %s297, 8
          %s299 = scalar_lea.vmem %s0, %s298
          %s300 = smul.u32 16, %s29
        $region44: #{tpu_custom_call.1} parent=39 // pred_fallthru
          _
        // Predicated region
        $region45: #{tpu_custom_call.1} parent=39 // pred_check
          %p301 = pneg %p81
        $region46: #{tpu_custom_call.1} parent=39 // pred_check_branch
          %303 = sbr.rel (%p301) target = $region48
        $region47: #{tpu_custom_call.1} parent=39 // pred_region
          %s304 = sand.u32 %s71, 1
          %s305 = scalar_lea.sflag [#allocation3], %s304
          %s306 = sand.u32 %s71, 1
          %s307 = smul.addr %s306, 128
          %s308 = scalar_lea.vmem [#allocation2], %s307
          %s310 = ssub.s32 2048, 2048
          %311 = vsyncadd %s305, %s310
          %s312 = smul.addr %s28, 16
          %s313 = smul.addr %s312, 128
          %s314 = scalar_lea.hbm %s1, %s313
          %s315 = sshll.u32 %s308, 4
          %s316 = int_to_ptr.vmem [resolvable:$true] %s315
          %321 = dma.hbm_to_vmem [thread:$0]  %s314, 2048, %s316, %s305, 128, 128, 8
        $region48: #{tpu_custom_call.1} parent=39 // pred_fallthru
          _
      $region40: #{tpu_custom_call.1} parent=5 // pred_fallthru
        _
      %p322 = scmp.le.s32.totalorder 1, %s21
      %p323 = scmp.lt.s32.totalorder %s21, 3
      %p324 = pnand %p322, %p323
      %p325 = pneg %p324
      // Predicated region
      $region49: #{tpu_custom_call.1} parent=5 // pred_check
        _
      $region50: #{tpu_custom_call.1} parent=5 // pred_check_branch
        %327 = sbr.rel (%p324) target = $region52
      $region51: #{tpu_custom_call.1} parent=5 // pred_region
        %s328 = ssub.s32 %s21, 1
        %s329 = sand.u32 %s74, 1
        %s330 = scalar_lea.sflag [#allocation3], %s329
        %s331 = sand.u32 %s74, 1
        %s332 = smul.addr %s331, 128
        %s333 = scalar_lea.vmem [#allocation2], %s332
        // Predicated region
        $region53: #{tpu_custom_call.1} parent=51 // pred_check
          %p334 = pneg %p87
        $region54: #{tpu_custom_call.1} parent=51 // pred_check_branch
          %336 = sbr.rel (%p334) target = $region56
        $region55: #{tpu_custom_call.1} parent=51 // pred_region
          %337 = dma.done %s330, 2048
        $region56: #{tpu_custom_call.1} parent=51 // pred_fallthru
          _
        // Predicated region
        $region57: #{tpu_custom_call.1} parent=51 // pred_check
          %p338 = pneg %p192
        $region58: #{tpu_custom_call.1} parent=51 // pred_check_branch
          %340 = sbr.rel (%p338) target = $region60
        $region59: #{tpu_custom_call.1} parent=51 // pred_region
          %341 = dma.done [#allocation6], 4096
        $region60: #{tpu_custom_call.1} parent=51 // pred_fallthru
          _
        %s342 = smul.u32 16, %s31
        %p343 = scmp.lt.s32.totalorder %s30, 1
        %s344 = scalar_select %p343, %s30, 1
        %p345 = scmp.lt.s32.totalorder %s342, 15
        %s346 = scalar_select %p345, %s342, 15
        %s347 = smul.addr %s344, 16
        %s348 = sadd.s32 %s346, %s347
        %s349 = smul.addr %s348, 8
        %s350 = scalar_lea.vmem %s0, %s349
        %p351 = pneg %p61
        %p352 = pneg %p58
        %s353 = sand.u32 %s74, 1
        %s354 = scalar_lea.sflag [#allocation3], %s353
        %s355 = sand.u32 %s74, 1
        %s356 = smul.addr %s355, 128
        %s357 = scalar_lea.vmem [#allocation2], %s356
        %p358 = pneg %p87
        %p359 = pneg %p84
        %p360 = pneg %p108
        %p361 = pneg %p105
        %p362 = pneg %p129
        %p363 = pneg %p126
        %p364 = pneg %p150
        %p365 = pneg %p147
        %p366 = pneg %p171
        %p367 = pneg %p168
        %p368 = pneg %p192
        %p369 = pneg %p189
        %p370 = pneg %p213
        %p371 = pneg %p210
        %p372 = pneg %p241
        %p373 = pneg %p238
        %s374 = sand.u32 %s228, 1
        %s375 = scalar_lea.sflag [#allocation4], %s374
        %s376 = sand.u32 %s228, 1
        %s377 = smul.addr %s376, 256
        %s378 = scalar_lea.vmem [#allocation7], %s377
        %s379 = smul.u32 16, %s31
        %p380 = scmp.lt.s32.totalorder %s30, 1
        %s381 = scalar_select %p380, %s30, 1
        %p382 = scmp.lt.s32.totalorder %s379, 15
        %s383 = scalar_select %p382, %s379, 15
        %s384 = smul.addr %s381, 16
        %s385 = sadd.s32 %s383, %s384
        %s386 = smul.addr %s385, 8
        %s387 = scalar_lea.vmem %s0, %s386
        %s388 = smul.u32 16, %s31
        %s389 = smul.u32 16, %s31
        %v390 = vld [vmem:[%s387] sm:$0xff]
        %v391 = vld [vmem:[%s387 + $0x8] sm:$0xff]
        %v392 = vld [vmem:[%s387 + $0x10] sm:$0xff]
        %v393 = vld [vmem:[%s387 + $0x18] sm:$0xff]
        %v394 = vld [vmem:[%s387 + $0x20] sm:$0xff]
        %v395 = vld [vmem:[%s387 + $0x28] sm:$0xff]
        %v396 = vld [vmem:[%s387 + $0x30] sm:$0xff]
        %v397 = vld [vmem:[%s387 + $0x38] sm:$0xff]
        %v398 = vld [vmem:[%s387 + $0x40] sm:$0xff]
        %v399 = vld [vmem:[%s387 + $0x48] sm:$0xff]
        %v400 = vld [vmem:[%s387 + $0x50] sm:$0xff]
        %v401 = vld [vmem:[%s387 + $0x58] sm:$0xff]
        %v402 = vld [vmem:[%s387 + $0x60] sm:$0xff]
        %v403 = vld [vmem:[%s387 + $0x68] sm:$0xff]
        %v404 = vld [vmem:[%s387 + $0x70] sm:$0xff]
        %v405 = vld [vmem:[%s387 + $0x78] sm:$0xff]
        %v406 = vld [vmem:[%s333] sm:$0xff]
        %v407 = vld [vmem:[%s333 + $0x8] sm:$0xff]
        %v408 = vld [vmem:[%s333 + $0x10] sm:$0xff]
        %v409 = vld [vmem:[%s333 + $0x18] sm:$0xff]
        %v410 = vld [vmem:[%s333 + $0x20] sm:$0xff]
        %v411 = vld [vmem:[%s333 + $0x28] sm:$0xff]
        %v412 = vld [vmem:[%s333 + $0x30] sm:$0xff]
        %v413 = vld [vmem:[%s333 + $0x38] sm:$0xff]
        %v414 = vld [vmem:[%s333 + $0x40] sm:$0xff]
        %v415 = vld [vmem:[%s333 + $0x48] sm:$0xff]
        %v416 = vld [vmem:[%s333 + $0x50] sm:$0xff]
        %v417 = vld [vmem:[%s333 + $0x58] sm:$0xff]
        %v418 = vld [vmem:[%s333 + $0x60] sm:$0xff]
        %v419 = vld [vmem:[%s333 + $0x68] sm:$0xff]
        %v420 = vld [vmem:[%s333 + $0x70] sm:$0xff]
        %v421 = vld [vmem:[%s333 + $0x78] sm:$0xff]
        %v422 = vld [vmem:[%s2] sm:$0xff]
        %v423 = vld [vmem:[%s2 + $0x8] sm:$0xff]
        %v424 = vld [vmem:[%s2 + $0x10] sm:$0xff]
        %v425 = vld [vmem:[%s2 + $0x18] sm:$0xff]
        %v426 = vld [vmem:[%s2 + $0x20] sm:$0xff]
        %v427 = vld [vmem:[%s2 + $0x28] sm:$0xff]
        %v428 = vld [vmem:[%s2 + $0x30] sm:$0xff]
        %v429 = vld [vmem:[%s2 + $0x38] sm:$0xff]
        %v430 = vld [vmem:[%s2 + $0x40] sm:$0xff]
        %v431 = vld [vmem:[%s2 + $0x48] sm:$0xff]
        %v432 = vld [vmem:[%s2 + $0x50] sm:$0xff]
        %v433 = vld [vmem:[%s2 + $0x58] sm:$0xff]
        %v434 = vld [vmem:[%s2 + $0x60] sm:$0xff]
        %v435 = vld [vmem:[%s2 + $0x68] sm:$0xff]
        %v436 = vld [vmem:[%s2 + $0x70] sm:$0xff]
        %v437 = vld [vmem:[%s2 + $0x78] sm:$0xff]
        %v438 = vld [vmem:[%s3] sm:$0x1]
        %v440 = vlaneseq
        %v441 = vshrl.u32 %v440, 7
        %v442 = vsub.s32 0, %v441
        %v443 = vrot.slane %v438, %v442
        %445 = vmatprep.subr.mxu0 0.0
        %446 = vmatpush1.msra.mxu0 %v422
        %447 = vmatprep.subr.mxu0 0.0
        %448 = vmatpush1.msra.mxu0 %v423
        %449 = vmatprep.subr.mxu0 0.0
        %450 = vmatpush1.msra.mxu0 %v424
        %451 = vmatprep.subr.mxu0 0.0
        %452 = vmatpush1.msra.mxu0 %v425
        %453 = vmatprep.subr.mxu0 0.0
        %454 = vmatpush1.msra.mxu0 %v426
        %455 = vmatprep.subr.mxu0 0.0
        %456 = vmatpush1.msra.mxu0 %v427
        %457 = vmatprep.subr.mxu0 0.0
        %458 = vmatpush1.msra.mxu0 %v428
        %459 = vmatprep.subr.mxu0 0.0
        %460 = vmatpush1.msra.mxu0 %v429
        %461 = vmatprep.subr.mxu0 0.0
        %462 = vmatpush1.msra.mxu0 %v430
        %463 = vmatprep.subr.mxu0 0.0
        %464 = vmatpush1.msra.mxu0 %v431
        %465 = vmatprep.subr.mxu0 0.0
        %466 = vmatpush1.msra.mxu0 %v432
        %467 = vmatprep.subr.mxu0 0.0
        %468 = vmatpush1.msra.mxu0 %v433
        %469 = vmatprep.subr.mxu0 0.0
        %470 = vmatpush1.msra.mxu0 %v434
        %471 = vmatprep.subr.mxu0 0.0
        %472 = vmatpush1.msra.mxu0 %v435
        %473 = vmatprep.subr.mxu0 0.0
        %474 = vmatpush1.msra.mxu0 %v436
        %475 = vmatprep.subr.mxu0 0.0
        %476 = vmatpush1.msra.mxu0 %v437
        %477 = vmatprep.subr.mxu0 0.0
        %478 = vmatpush1.msra.mxu0 0.0
        %479 = vmatprep.subr.mxu0 0.0
        %480 = vmatpush1.msra.mxu0 0.0
        %481 = vmatprep.subr.mxu0 0.0
        %482 = vmatpush1.msra.mxu0 0.0
        %483 = vmatprep.subr.mxu0 0.0
        %484 = vmatpush1.msra.mxu0 0.0
        %485 = vmatprep.subr.mxu0 0.0
        %486 = vmatpush1.msra.mxu0 0.0
        %487 = vmatprep.subr.mxu0 0.0
        %488 = vmatpush1.msra.mxu0 0.0
        %489 = vmatprep.subr.mxu0 0.0
        %490 = vmatpush1.msra.mxu0 0.0
        %491 = vmatprep.subr.mxu0 0.0
        %492 = vmatpush1.msra.mxu0 0.0
        %493 = vmatprep.subr.mxu0 0.0
        %494 = vmatpush1.msra.mxu0 0.0
        %495 = vmatprep.subr.mxu0 0.0
        %496 = vmatpush1.msra.mxu0 0.0
        %497 = vmatprep.subr.mxu0 0.0
        %498 = vmatpush1.msra.mxu0 0.0
        %499 = vmatprep.subr.mxu0 0.0
        %500 = vmatpush1.msra.mxu0 0.0
        %501 = vmatprep.subr.mxu0 0.0
        %502 = vmatpush1.msra.mxu0 0.0
        %503 = vmatprep.subr.mxu0 0.0
        %504 = vmatpush1.msra.mxu0 0.0
        %505 = vmatprep.subr.mxu0 0.0
        %506 = vmatpush1.msra.mxu0 0.0
        %507 = vmatprep.subr.mxu0 0.0
        %508 = vmatpush1.msra.mxu0 0.0
        %509 = vmatprep.mubr.f32.mxu0 0.0
        %510 = vmatmul.mubr.f32.gmra.mrb[0].mxu0 %v390
        %v511 = vpop.f32.mrb[0].mxu0
        %v512 = vadd.f32 %v443, %v511
        %v513 = vpop.f32.mrb[0].mxu0
        %514 = vmatprep.mubr.f32.mxu0 0.0
        %515 = vmatmul.mubr.f32.gmra.mrb[0].mxu0 %v391
        %v516 = vpop.f32.mrb[0].mxu0
        %v517 = vadd.f32 %v443, %v516
        %v518 = vpop.f32.mrb[0].mxu0
        %519 = vmatprep.mubr.f32.mxu0 0.0
        %520 = vmatmul.mubr.f32.gmra.mrb[0].mxu0 %v392
        %v521 = vpop.f32.mrb[0].mxu0
        %v522 = vadd.f32 %v443, %v521
        %v523 = vpop.f32.mrb[0].mxu0
        %524 = vmatprep.mubr.f32.mxu0 0.0
        %525 = vmatmul.mubr.f32.gmra.mrb[0].mxu0 %v393
        %v526 = vpop.f32.mrb[0].mxu0
        %v527 = vadd.f32 %v443, %v526
        %v528 = vpop.f32.mrb[0].mxu0
        %529 = vmatprep.mubr.f32.mxu0 0.0
        %530 = vmatmul.mubr.f32.gmra.mrb[0].mxu0 %v394
        %v531 = vpop.f32.mrb[0].mxu0
        %v532 = vadd.f32 %v443, %v531
        %v533 = vpop.f32.mrb[0].mxu0
        %534 = vmatprep.mubr.f32.mxu0 0.0
        %535 = vmatmul.mubr.f32.gmra.mrb[0].mxu0 %v395
        %v536 = vpop.f32.mrb[0].mxu0
        %v537 = vadd.f32 %v443, %v536
        %v538 = vpop.f32.mrb[0].mxu0
        %539 = vmatprep.mubr.f32.mxu0 0.0
        %540 = vmatmul.mubr.f32.gmra.mrb[0].mxu0 %v396
        %v541 = vpop.f32.mrb[0].mxu0
        %v542 = vadd.f32 %v443, %v541
        %v543 = vpop.f32.mrb[0].mxu0
        %544 = vmatprep.mubr.f32.mxu0 0.0
        %545 = vmatmul.mubr.f32.gmra.mrb[0].mxu0 %v397
        %v546 = vpop.f32.mrb[0].mxu0
        %v547 = vadd.f32 %v443, %v546
        %v548 = vpop.f32.mrb[0].mxu0
        %549 = vmatprep.mubr.f32.mxu0 0.0
        %550 = vmatmul.mubr.f32.gmra.mrb[0].mxu0 %v398
        %v551 = vpop.f32.mrb[0].mxu0
        %v552 = vadd.f32 %v443, %v551
        %v553 = vpop.f32.mrb[0].mxu0
        %554 = vmatprep.mubr.f32.mxu0 0.0
        %555 = vmatmul.mubr.f32.gmra.mrb[0].mxu0 %v399
        %v556 = vpop.f32.mrb[0].mxu0
        %v557 = vadd.f32 %v443, %v556
        %v558 = vpop.f32.mrb[0].mxu0
        %559 = vmatprep.mubr.f32.mxu0 0.0
        %560 = vmatmul.mubr.f32.gmra.mrb[0].mxu0 %v400
        %v561 = vpop.f32.mrb[0].mxu0
        %v562 = vadd.f32 %v443, %v561
        %v563 = vpop.f32.mrb[0].mxu0
        %564 = vmatprep.mubr.f32.mxu0 0.0
        %565 = vmatmul.mubr.f32.gmra.mrb[0].mxu0 %v401
        %v566 = vpop.f32.mrb[0].mxu0
        %v567 = vadd.f32 %v443, %v566
        %v568 = vpop.f32.mrb[0].mxu0
        %569 = vmatprep.mubr.f32.mxu0 0.0
        %570 = vmatmul.mubr.f32.gmra.mrb[0].mxu0 %v402
        %v571 = vpop.f32.mrb[0].mxu0
        %v572 = vadd.f32 %v443, %v571
        %v573 = vpop.f32.mrb[0].mxu0
        %574 = vmatprep.mubr.f32.mxu0 0.0
        %575 = vmatmul.mubr.f32.gmra.mrb[0].mxu0 %v403
        %v576 = vpop.f32.mrb[0].mxu0
        %v577 = vadd.f32 %v443, %v576
        %v578 = vpop.f32.mrb[0].mxu0
        %579 = vmatprep.mubr.f32.mxu0 0.0
        %580 = vmatmul.mubr.f32.gmra.mrb[0].mxu0 %v404
        %v581 = vpop.f32.mrb[0].mxu0
        %v582 = vadd.f32 %v443, %v581
        %v583 = vpop.f32.mrb[0].mxu0
        %584 = vmatprep.mubr.f32.mxu0 0.0
        %585 = vmatmul.mubr.f32.gmra.mrb[0].mxu0 %v405
        %v586 = vpop.f32.mrb[0].mxu0
        %v587 = vadd.f32 %v443, %v586
        %v588 = vpop.f32.mrb[0].mxu0
        %589 = vdwg.mxu0
        %v590 = vld [vmem:[%s4] sm:$0xff]
        %v591 = vld [vmem:[%s4 + $0x8] sm:$0xff]
        %v592 = vld [vmem:[%s4 + $0x10] sm:$0xff]
        %v593 = vld [vmem:[%s4 + $0x18] sm:$0xff]
        %v594 = vld [vmem:[%s4 + $0x20] sm:$0xff]
        %v595 = vld [vmem:[%s4 + $0x28] sm:$0xff]
        %v596 = vld [vmem:[%s4 + $0x30] sm:$0xff]
        %v597 = vld [vmem:[%s4 + $0x38] sm:$0xff]
        %v598 = vld [vmem:[%s4 + $0x40] sm:$0xff]
        %v599 = vld [vmem:[%s4 + $0x48] sm:$0xff]
        %v600 = vld [vmem:[%s4 + $0x50] sm:$0xff]
        %v601 = vld [vmem:[%s4 + $0x58] sm:$0xff]
        %v602 = vld [vmem:[%s4 + $0x60] sm:$0xff]
        %v603 = vld [vmem:[%s4 + $0x68] sm:$0xff]
        %v604 = vld [vmem:[%s4 + $0x70] sm:$0xff]
        %v605 = vld [vmem:[%s4 + $0x78] sm:$0xff]
        %v606 = vld [vmem:[%s5] sm:$0x1]
        %v608 = vlaneseq
        %v609 = vshrl.u32 %v608, 7
        %v610 = vsub.s32 0, %v609
        %v611 = vrot.slane %v606, %v610
        %613 = vmatprep.subr.mxu0 0.0
        %614 = vmatpush1.msra.mxu0 %v590
        %615 = vmatprep.subr.mxu0 0.0
        %616 = vmatpush1.msra.mxu0 %v591
        %617 = vmatprep.subr.mxu0 0.0
        %618 = vmatpush1.msra.mxu0 %v592
        %619 = vmatprep.subr.mxu0 0.0
        %620 = vmatpush1.msra.mxu0 %v593
        %621 = vmatprep.subr.mxu0 0.0
        %622 = vmatpush1.msra.mxu0 %v594
        %623 = vmatprep.subr.mxu0 0.0
        %624 = vmatpush1.msra.mxu0 %v595
        %625 = vmatprep.subr.mxu0 0.0
        %626 = vmatpush1.msra.mxu0 %v596
        %627 = vmatprep.subr.mxu0 0.0
        %628 = vmatpush1.msra.mxu0 %v597
        %629 = vmatprep.subr.mxu0 0.0
        %630 = vmatpush1.msra.mxu0 %v598
        %631 = vmatprep.subr.mxu0 0.0
        %632 = vmatpush1.msra.mxu0 %v599
        %633 = vmatprep.subr.mxu0 0.0
        %634 = vmatpush1.msra.mxu0 %v600
        %635 = vmatprep.subr.mxu0 0.0
        %636 = vmatpush1.msra.mxu0 %v601
        %637 = vmatprep.subr.mxu0 0.0
        %638 = vmatpush1.msra.mxu0 %v602
        %639 = vmatprep.subr.mxu0 0.0
        %640 = vmatpush1.msra.mxu0 %v603
        %641 = vmatprep.subr.mxu0 0.0
        %642 = vmatpush1.msra.mxu0 %v604
        %643 = vmatprep.subr.mxu0 0.0
        %644 = vmatpush1.msra.mxu0 %v605
        %645 = vmatprep.subr.mxu0 0.0
        %646 = vmatpush1.msra.mxu0 0.0
        %647 = vmatprep.subr.mxu0 0.0
        %648 = vmatpush1.msra.mxu0 0.0
        %649 = vmatprep.subr.mxu0 0.0
        %650 = vmatpush1.msra.mxu0 0.0
        %651 = vmatprep.subr.mxu0 0.0
        %652 = vmatpush1.msra.mxu0 0.0
        %653 = vmatprep.subr.mxu0 0.0
        %654 = vmatpush1.msra.mxu0 0.0
        %655 = vmatprep.subr.mxu0 0.0
        %656 = vmatpush1.msra.mxu0 0.0
        %657 = vmatprep.subr.mxu0 0.0
        %658 = vmatpush1.msra.mxu0 0.0
        %659 = vmatprep.subr.mxu0 0.0
        %660 = vmatpush1.msra.mxu0 0.0
        %661 = vmatprep.subr.mxu0 0.0
        %662 = vmatpush1.msra.mxu0 0.0
        %663 = vmatprep.subr.mxu0 0.0
        %664 = vmatpush1.msra.mxu0 0.0
        %665 = vmatprep.subr.mxu0 0.0
        %666 = vmatpush1.msra.mxu0 0.0
        %667 = vmatprep.subr.mxu0 0.0
        %668 = vmatpush1.msra.mxu0 0.0
        %669 = vmatprep.subr.mxu0 0.0
        %670 = vmatpush1.msra.mxu0 0.0
        %671 = vmatprep.subr.mxu0 0.0
        %672 = vmatpush1.msra.mxu0 0.0
        %673 = vmatprep.subr.mxu0 0.0
        %674 = vmatpush1.msra.mxu0 0.0
        %675 = vmatprep.subr.mxu0 0.0
        %676 = vmatpush1.msra.mxu0 0.0
        %677 = vmatprep.mubr.f32.mxu0 0.0
        %678 = vmatmul.mubr.f32.gmra.mrb[0].mxu0 %v406
        %v679 = vpop.f32.mrb[0].mxu0
        %v680 = vadd.f32 %v611, %v679
        %v681 = vpop.f32.mrb[0].mxu0
        %682 = vmatprep.mubr.f32.mxu0 0.0
        %683 = vmatmul.mubr.f32.gmra.mrb[0].mxu0 %v407
        %v684 = vpop.f32.mrb[0].mxu0
        %v685 = vadd.f32 %v611, %v684
        %v686 = vpop.f32.mrb[0].mxu0
        %687 = vmatprep.mubr.f32.mxu0 0.0
        %688 = vmatmul.mubr.f32.gmra.mrb[0].mxu0 %v408
        %v689 = vpop.f32.mrb[0].mxu0
        %v690 = vadd.f32 %v611, %v689
        %v691 = vpop.f32.mrb[0].mxu0
        %692 = vmatprep.mubr.f32.mxu0 0.0
        %693 = vmatmul.mubr.f32.gmra.mrb[0].mxu0 %v409
        %v694 = vpop.f32.mrb[0].mxu0
        %v695 = vadd.f32 %v611, %v694
        %v696 = vpop.f32.mrb[0].mxu0
        %697 = vmatprep.mubr.f32.mxu0 0.0
        %698 = vmatmul.mubr.f32.gmra.mrb[0].mxu0 %v410
        %v699 = vpop.f32.mrb[0].mxu0
        %v700 = vadd.f32 %v611, %v699
        %v701 = vpop.f32.mrb[0].mxu0
        %702 = vmatprep.mubr.f32.mxu0 0.0
        %703 = vmatmul.mubr.f32.gmra.mrb[0].mxu0 %v411
        %v704 = vpop.f32.mrb[0].mxu0
        %v705 = vadd.f32 %v611, %v704
        %v706 = vpop.f32.mrb[0].mxu0
        %707 = vmatprep.mubr.f32.mxu0 0.0
        %708 = vmatmul.mubr.f32.gmra.mrb[0].mxu0 %v412
        %v709 = vpop.f32.mrb[0].mxu0
        %v710 = vadd.f32 %v611, %v709
        %v711 = vpop.f32.mrb[0].mxu0
        %712 = vmatprep.mubr.f32.mxu0 0.0
        %713 = vmatmul.mubr.f32.gmra.mrb[0].mxu0 %v413
        %v714 = vpop.f32.mrb[0].mxu0
        %v715 = vadd.f32 %v611, %v714
        %v716 = vpop.f32.mrb[0].mxu0
        %717 = vmatprep.mubr.f32.mxu0 0.0
        %718 = vmatmul.mubr.f32.gmra.mrb[0].mxu0 %v414
        %v719 = vpop.f32.mrb[0].mxu0
        %v720 = vadd.f32 %v611, %v719
        %v721 = vpop.f32.mrb[0].mxu0
        %722 = vmatprep.mubr.f32.mxu0 0.0
        %723 = vmatmul.mubr.f32.gmra.mrb[0].mxu0 %v415
        %v724 = vpop.f32.mrb[0].mxu0
        %v725 = vadd.f32 %v611, %v724
        %v726 = vpop.f32.mrb[0].mxu0
        %727 = vmatprep.mubr.f32.mxu0 0.0
        %728 = vmatmul.mubr.f32.gmra.mrb[0].mxu0 %v416
        %v729 = vpop.f32.mrb[0].mxu0
        %v730 = vadd.f32 %v611, %v729
        %v731 = vpop.f32.mrb[0].mxu0
        %732 = vmatprep.mubr.f32.mxu0 0.0
        %733 = vmatmul.mubr.f32.gmra.mrb[0].mxu0 %v417
        %v734 = vpop.f32.mrb[0].mxu0
        %v735 = vadd.f32 %v611, %v734
        %v736 = vpop.f32.mrb[0].mxu0
        %737 = vmatprep.mubr.f32.mxu0 0.0
        %738 = vmatmul.mubr.f32.gmra.mrb[0].mxu0 %v418
        %v739 = vpop.f32.mrb[0].mxu0
        %v740 = vadd.f32 %v611, %v739
        %v741 = vpop.f32.mrb[0].mxu0
        %742 = vmatprep.mubr.f32.mxu0 0.0
        %743 = vmatmul.mubr.f32.gmra.mrb[0].mxu0 %v419
        %v744 = vpop.f32.mrb[0].mxu0
        %v745 = vadd.f32 %v611, %v744
        %v746 = vpop.f32.mrb[0].mxu0
        %747 = vmatprep.mubr.f32.mxu0 0.0
        %748 = vmatmul.mubr.f32.gmra.mrb[0].mxu0 %v420
        %v749 = vpop.f32.mrb[0].mxu0
        %v750 = vadd.f32 %v611, %v749
        %v751 = vpop.f32.mrb[0].mxu0
        %752 = vmatprep.mubr.f32.mxu0 0.0
        %753 = vmatmul.mubr.f32.gmra.mrb[0].mxu0 %v421
        %v754 = vpop.f32.mrb[0].mxu0
        %v755 = vadd.f32 %v611, %v754
        %v756 = vpop.f32.mrb[0].mxu0
        %757 = vdwg.mxu0
        %v758 = vld [vmem:[#allocation5] sm:$0xff]
        %v759 = vld [vmem:[#allocation5 + $0x8] sm:$0xff]
        %v760 = vld [vmem:[#allocation5 + $0x10] sm:$0xff]
        %v761 = vld [vmem:[#allocation5 + $0x18] sm:$0xff]
        %v762 = vld [vmem:[#allocation5 + $0x20] sm:$0xff]
        %v763 = vld [vmem:[#allocation5 + $0x28] sm:$0xff]
        %v764 = vld [vmem:[#allocation5 + $0x30] sm:$0xff]
        %v765 = vld [vmem:[#allocation5 + $0x38] sm:$0xff]
        %v766 = vld [vmem:[#allocation5 + $0x40] sm:$0xff]
        %v767 = vld [vmem:[#allocation5 + $0x48] sm:$0xff]
        %v768 = vld [vmem:[#allocation5 + $0x50] sm:$0xff]
        %v769 = vld [vmem:[#allocation5 + $0x58] sm:$0xff]
        %v770 = vld [vmem:[#allocation5 + $0x60] sm:$0xff]
        %v771 = vld [vmem:[#allocation5 + $0x68] sm:$0xff]
        %v772 = vld [vmem:[#allocation5 + $0x70] sm:$0xff]
        %v773 = vld [vmem:[#allocation5 + $0x78] sm:$0xff]
        %v774 = vld [vmem:[#allocation5 + $0x80] sm:$0xff]
        %v775 = vld [vmem:[#allocation5 + $0x88] sm:$0xff]
        %v776 = vld [vmem:[#allocation5 + $0x90] sm:$0xff]
        %v777 = vld [vmem:[#allocation5 + $0x98] sm:$0xff]
        %v778 = vld [vmem:[#allocation5 + $0xa0] sm:$0xff]
        %v779 = vld [vmem:[#allocation5 + $0xa8] sm:$0xff]
        %v780 = vld [vmem:[#allocation5 + $0xb0] sm:$0xff]
        %v781 = vld [vmem:[#allocation5 + $0xb8] sm:$0xff]
        %v782 = vld [vmem:[#allocation5 + $0xc0] sm:$0xff]
        %v783 = vld [vmem:[#allocation5 + $0xc8] sm:$0xff]
        %v784 = vld [vmem:[#allocation5 + $0xd0] sm:$0xff]
        %v785 = vld [vmem:[#allocation5 + $0xd8] sm:$0xff]
        %v786 = vld [vmem:[#allocation5 + $0xe0] sm:$0xff]
        %v787 = vld [vmem:[#allocation5 + $0xe8] sm:$0xff]
        %v788 = vld [vmem:[#allocation5 + $0xf0] sm:$0xff]
        %v789 = vld [vmem:[#allocation5 + $0xf8] sm:$0xff]
        %v790 = vld [vmem:[%s7] sm:$0x3]
        %v792 = vlaneseq
        %v793 = vshrl.u32 %v792, 7
        %v794 = vsub.s32 0, %v793
        %v795 = vrot.slane %v790, %v794
        %v796 = vlaneseq
        %v797 = vshrl.u32 %v796, 7
        %v798 = vsub.s32 1, %v797
        %v799 = vrot.slane %v790, %v798
        %802 = vmatprep.subr.mxu0 %v759
        %803 = vmatpush1.msra.mxu0 %v758
        %804 = vmatprep.subr.mxu0 %v761
        %805 = vmatpush1.msra.mxu0 %v760
        %806 = vmatprep.subr.mxu0 %v763
        %807 = vmatpush1.msra.mxu0 %v762
        %808 = vmatprep.subr.mxu0 %v765
        %809 = vmatpush1.msra.mxu0 %v764
        %810 = vmatprep.subr.mxu0 %v767
        %811 = vmatpush1.msra.mxu0 %v766
        %812 = vmatprep.subr.mxu0 %v769
        %813 = vmatpush1.msra.mxu0 %v768
        %814 = vmatprep.subr.mxu0 %v771
        %815 = vmatpush1.msra.mxu0 %v770
        %816 = vmatprep.subr.mxu0 %v773
        %817 = vmatpush1.msra.mxu0 %v772
        %818 = vmatprep.subr.mxu0 %v775
        %819 = vmatpush1.msra.mxu0 %v774
        %820 = vmatprep.subr.mxu0 %v777
        %821 = vmatpush1.msra.mxu0 %v776
        %822 = vmatprep.subr.mxu0 %v779
        %823 = vmatpush1.msra.mxu0 %v778
        %824 = vmatprep.subr.mxu0 %v781
        %825 = vmatpush1.msra.mxu0 %v780
        %826 = vmatprep.subr.mxu0 %v783
        %827 = vmatpush1.msra.mxu0 %v782
        %828 = vmatprep.subr.mxu0 %v785
        %829 = vmatpush1.msra.mxu0 %v784
        %830 = vmatprep.subr.mxu0 %v787
        %831 = vmatpush1.msra.mxu0 %v786
        %832 = vmatprep.subr.mxu0 %v789
        %833 = vmatpush1.msra.mxu0 %v788
        %834 = vmatprep.subr.mxu0 0.0
        %835 = vmatpush1.msra.mxu0 0.0
        %836 = vmatprep.subr.mxu0 0.0
        %837 = vmatpush1.msra.mxu0 0.0
        %838 = vmatprep.subr.mxu0 0.0
        %839 = vmatpush1.msra.mxu0 0.0
        %840 = vmatprep.subr.mxu0 0.0
        %841 = vmatpush1.msra.mxu0 0.0
        %842 = vmatprep.subr.mxu0 0.0
        %843 = vmatpush1.msra.mxu0 0.0
        %844 = vmatprep.subr.mxu0 0.0
        %845 = vmatpush1.msra.mxu0 0.0
        %846 = vmatprep.subr.mxu0 0.0
        %847 = vmatpush1.msra.mxu0 0.0
        %848 = vmatprep.subr.mxu0 0.0
        %849 = vmatpush1.msra.mxu0 0.0
        %850 = vmatprep.subr.mxu0 0.0
        %851 = vmatpush1.msra.mxu0 0.0
        %852 = vmatprep.subr.mxu0 0.0
        %853 = vmatpush1.msra.mxu0 0.0
        %854 = vmatprep.subr.mxu0 0.0
        %855 = vmatpush1.msra.mxu0 0.0
        %856 = vmatprep.subr.mxu0 0.0
        %857 = vmatpush1.msra.mxu0 0.0
        %858 = vmatprep.subr.mxu0 0.0
        %859 = vmatpush1.msra.mxu0 0.0
        %860 = vmatprep.subr.mxu0 0.0
        %861 = vmatpush1.msra.mxu0 0.0
        %862 = vmatprep.subr.mxu0 0.0
        %863 = vmatpush1.msra.mxu0 0.0
        %864 = vmatprep.subr.mxu0 0.0
        %865 = vmatpush1.msra.mxu0 0.0
        %866 = vmatprep.mubr.f32.mxu0 0.0
        %867 = vmatmul.mubr.f32.gmra.mrb[0].mxu0 %v406
        %v868 = vpop.f32.mrb[0].mxu0
        %v869 = vadd.f32 %v795, %v868
        %v870 = vpop.f32.mrb[0].mxu0
        %v871 = vadd.f32 %v799, %v870
        %872 = vmatprep.mubr.f32.mxu0 0.0
        %873 = vmatmul.mubr.f32.gmra.mrb[0].mxu0 %v407
        %v874 = vpop.f32.mrb[0].mxu0
        %v875 = vadd.f32 %v795, %v874
        %v876 = vpop.f32.mrb[0].mxu0
        %v877 = vadd.f32 %v799, %v876
        %878 = vmatprep.mubr.f32.mxu0 0.0
        %879 = vmatmul.mubr.f32.gmra.mrb[0].mxu0 %v408
        %v880 = vpop.f32.mrb[0].mxu0
        %v881 = vadd.f32 %v795, %v880
        %v882 = vpop.f32.mrb[0].mxu0
        %v883 = vadd.f32 %v799, %v882
        %884 = vmatprep.mubr.f32.mxu0 0.0
        %885 = vmatmul.mubr.f32.gmra.mrb[0].mxu0 %v409
        %v886 = vpop.f32.mrb[0].mxu0
        %v887 = vadd.f32 %v795, %v886
        %v888 = vpop.f32.mrb[0].mxu0
        %v889 = vadd.f32 %v799, %v888
        %890 = vmatprep.mubr.f32.mxu0 0.0
        %891 = vmatmul.mubr.f32.gmra.mrb[0].mxu0 %v410
        %v892 = vpop.f32.mrb[0].mxu0
        %v893 = vadd.f32 %v795, %v892
        %v894 = vpop.f32.mrb[0].mxu0
        %v895 = vadd.f32 %v799, %v894
        %896 = vmatprep.mubr.f32.mxu0 0.0
        %897 = vmatmul.mubr.f32.gmra.mrb[0].mxu0 %v411
        %v898 = vpop.f32.mrb[0].mxu0
        %v899 = vadd.f32 %v795, %v898
        %v900 = vpop.f32.mrb[0].mxu0
        %v901 = vadd.f32 %v799, %v900
        %902 = vmatprep.mubr.f32.mxu0 0.0
        %903 = vmatmul.mubr.f32.gmra.mrb[0].mxu0 %v412
        %v904 = vpop.f32.mrb[0].mxu0
        %v905 = vadd.f32 %v795, %v904
        %v906 = vpop.f32.mrb[0].mxu0
        %v907 = vadd.f32 %v799, %v906
        %908 = vmatprep.mubr.f32.mxu0 0.0
        %909 = vmatmul.mubr.f32.gmra.mrb[0].mxu0 %v413
        %v910 = vpop.f32.mrb[0].mxu0
        %v911 = vadd.f32 %v795, %v910
        %v912 = vpop.f32.mrb[0].mxu0
        %v913 = vadd.f32 %v799, %v912
        %914 = vmatprep.mubr.f32.mxu0 0.0
        %915 = vmatmul.mubr.f32.gmra.mrb[0].mxu0 %v414
        %v916 = vpop.f32.mrb[0].mxu0
        %v917 = vadd.f32 %v795, %v916
        %v918 = vpop.f32.mrb[0].mxu0
        %v919 = vadd.f32 %v799, %v918
        %920 = vmatprep.mubr.f32.mxu0 0.0
        %921 = vmatmul.mubr.f32.gmra.mrb[0].mxu0 %v415
        %v922 = vpop.f32.mrb[0].mxu0
        %v923 = vadd.f32 %v795, %v922
        %v924 = vpop.f32.mrb[0].mxu0
        %v925 = vadd.f32 %v799, %v924
        %926 = vmatprep.mubr.f32.mxu0 0.0
        %927 = vmatmul.mubr.f32.gmra.mrb[0].mxu0 %v416
        %v928 = vpop.f32.mrb[0].mxu0
        %v929 = vadd.f32 %v795, %v928
        %v930 = vpop.f32.mrb[0].mxu0
        %v931 = vadd.f32 %v799, %v930
        %932 = vmatprep.mubr.f32.mxu0 0.0
        %933 = vmatmul.mubr.f32.gmra.mrb[0].mxu0 %v417
        %v934 = vpop.f32.mrb[0].mxu0
        %v935 = vadd.f32 %v795, %v934
        %v936 = vpop.f32.mrb[0].mxu0
        %v937 = vadd.f32 %v799, %v936
        %938 = vmatprep.mubr.f32.mxu0 0.0
        %939 = vmatmul.mubr.f32.gmra.mrb[0].mxu0 %v418
        %v940 = vpop.f32.mrb[0].mxu0
        %v941 = vadd.f32 %v795, %v940
        %v942 = vpop.f32.mrb[0].mxu0
        %v943 = vadd.f32 %v799, %v942
        %944 = vmatprep.mubr.f32.mxu0 0.0
        %945 = vmatmul.mubr.f32.gmra.mrb[0].mxu0 %v419
        %v946 = vpop.f32.mrb[0].mxu0
        %v947 = vadd.f32 %v795, %v946
        %v948 = vpop.f32.mrb[0].mxu0
        %v949 = vadd.f32 %v799, %v948
        %950 = vmatprep.mubr.f32.mxu0 0.0
        %951 = vmatmul.mubr.f32.gmra.mrb[0].mxu0 %v420
        %v952 = vpop.f32.mrb[0].mxu0
        %v953 = vadd.f32 %v795, %v952
        %v954 = vpop.f32.mrb[0].mxu0
        %v955 = vadd.f32 %v799, %v954
        %956 = vmatprep.mubr.f32.mxu0 0.0
        %957 = vmatmul.mubr.f32.gmra.mrb[0].mxu0 %v421
        %v958 = vpop.f32.mrb[0].mxu0
        %v959 = vadd.f32 %v795, %v958
        %v960 = vpop.f32.mrb[0].mxu0
        %v961 = vadd.f32 %v799, %v960
        %962 = vdwg.mxu0
        %vm963 = vcmask 523264
        %v965 = vsel %vm963, %v512, 0
        %v968 = vsel %vm963, %v517, 0
        %v971 = vsel %vm963, %v522, 0
        %v974 = vsel %vm963, %v527, 0
        %v977 = vsel %vm963, %v532, 0
        %v980 = vsel %vm963, %v537, 0
        %v983 = vsel %vm963, %v542, 0
        %v986 = vsel %vm963, %v547, 0
        %v989 = vsel %vm963, %v552, 0
        %v992 = vsel %vm963, %v557, 0
        %v995 = vsel %vm963, %v562, 0
        %v998 = vsel %vm963, %v567, 0
        %v1001 = vsel %vm963, %v572, 0
        %v1004 = vsel %vm963, %v577, 0
        %v1007 = vsel %vm963, %v582, 0
        %v1010 = vsel %vm963, %v587, 0
        %v1013 = vsel %vm963, %v680, 0
        %v1016 = vsel %vm963, %v685, 0
        %v1019 = vsel %vm963, %v690, 0
        %v1022 = vsel %vm963, %v695, 0
        %v1025 = vsel %vm963, %v700, 0
        %v1028 = vsel %vm963, %v705, 0
        %v1031 = vsel %vm963, %v710, 0
        %v1034 = vsel %vm963, %v715, 0
        %v1037 = vsel %vm963, %v720, 0
        %v1040 = vsel %vm963, %v725, 0
        %v1043 = vsel %vm963, %v730, 0
        %v1046 = vsel %vm963, %v735, 0
        %v1049 = vsel %vm963, %v740, 0
        %v1052 = vsel %vm963, %v745, 0
        %v1055 = vsel %vm963, %v750, 0
        %v1058 = vsel %vm963, %v755, 0
        %1060 = vmatprep.subr.mxu0 0.0
        %1061 = vmatpush1.xpose.msra.mxu0 %v1013
        %1062 = vmatprep.subr.mxu0 0.0
        %1063 = vmatpush1.xpose.msra.mxu0 %v1016
        %1064 = vmatprep.subr.mxu0 0.0
        %1065 = vmatpush1.xpose.msra.mxu0 %v1019
        %1066 = vmatprep.subr.mxu0 0.0
        %1067 = vmatpush1.xpose.msra.mxu0 %v1022
        %1068 = vmatprep.subr.mxu0 0.0
        %1069 = vmatpush1.xpose.msra.mxu0 %v1025
        %1070 = vmatprep.subr.mxu0 0.0
        %1071 = vmatpush1.xpose.msra.mxu0 %v1028
        %1072 = vmatprep.subr.mxu0 0.0
        %1073 = vmatpush1.xpose.msra.mxu0 %v1031
        %1074 = vmatprep.subr.mxu0 0.0
        %1075 = vmatpush1.xpose.msra.mxu0 %v1034
        %1076 = vmatprep.subr.mxu0 0.0
        %1077 = vmatpush1.xpose.msra.mxu0 %v1037
        %1078 = vmatprep.subr.mxu0 0.0
        %1079 = vmatpush1.xpose.msra.mxu0 %v1040
        %1080 = vmatprep.subr.mxu0 0.0
        %1081 = vmatpush1.xpose.msra.mxu0 %v1043
        %1082 = vmatprep.subr.mxu0 0.0
        %1083 = vmatpush1.xpose.msra.mxu0 %v1046
        %1084 = vmatprep.subr.mxu0 0.0
        %1085 = vmatpush1.xpose.msra.mxu0 %v1049
        %1086 = vmatprep.subr.mxu0 0.0
        %1087 = vmatpush1.xpose.msra.mxu0 %v1052
        %1088 = vmatprep.subr.mxu0 0.0
        %1089 = vmatpush1.xpose.msra.mxu0 %v1055
        %1090 = vmatprep.subr.mxu0 0.0
        %1091 = vmatpush1.xpose.msra.mxu0 %v1058
        %1092 = vmatprep.subr.mxu0 0.0
        %1093 = vmatpush1.xpose.msra.mxu0 0.0
        %1094 = vmatprep.subr.mxu0 0.0
        %1095 = vmatpush1.xpose.msra.mxu0 0.0
        %1096 = vmatprep.subr.mxu0 0.0
        %1097 = vmatpush1.xpose.msra.mxu0 0.0
        %1098 = vmatprep.subr.mxu0 0.0
        %1099 = vmatpush1.xpose.msra.mxu0 0.0
        %1100 = vmatprep.subr.mxu0 0.0
        %1101 = vmatpush1.xpose.msra.mxu0 0.0
        %1102 = vmatprep.subr.mxu0 0.0
        %1103 = vmatpush1.xpose.msra.mxu0 0.0
        %1104 = vmatprep.subr.mxu0 0.0
        %1105 = vmatpush1.xpose.msra.mxu0 0.0
        %1106 = vmatprep.subr.mxu0 0.0
        %1107 = vmatpush1.xpose.msra.mxu0 0.0
        %1108 = vmatprep.subr.mxu0 0.0
        %1109 = vmatpush1.xpose.msra.mxu0 0.0
        %1110 = vmatprep.subr.mxu0 0.0
        %1111 = vmatpush1.xpose.msra.mxu0 0.0
        %1112 = vmatprep.subr.mxu0 0.0
        %1113 = vmatpush1.xpose.msra.mxu0 0.0
        %1114 = vmatprep.subr.mxu0 0.0
        %1115 = vmatpush1.xpose.msra.mxu0 0.0
        %1116 = vmatprep.subr.mxu0 0.0
        %1117 = vmatpush1.xpose.msra.mxu0 0.0
        %1118 = vmatprep.subr.mxu0 0.0
        %1119 = vmatpush1.xpose.msra.mxu0 0.0
        %1120 = vmatprep.subr.mxu0 0.0
        %1121 = vmatpush1.xpose.msra.mxu0 0.0
        %1122 = vmatprep.subr.mxu0 0.0
        %1123 = vmatpush1.xpose.msra.mxu0 0.0
        %1124 = vmatprep.mubr.f32.mxu0 0.0
        %1125 = vmatmul.mubr.f32.gmra.mrb[0].mxu0 %v965
        %v1126 = vpop.f32.mrb[0].mxu0
        %v1127 = vadd.f32 0.0, %v1126
        %v1128 = vpop.f32.mrb[0].mxu0
        %1129 = vmatprep.mubr.f32.mxu0 0.0
        %1130 = vmatmul.mubr.f32.gmra.mrb[0].mxu0 %v968
        %v1131 = vpop.f32.mrb[0].mxu0
        %v1132 = vadd.f32 0.0, %v1131
        %v1133 = vpop.f32.mrb[0].mxu0
        %1134 = vmatprep.mubr.f32.mxu0 0.0
        %1135 = vmatmul.mubr.f32.gmra.mrb[0].mxu0 %v971
        %v1136 = vpop.f32.mrb[0].mxu0
        %v1137 = vadd.f32 0.0, %v1136
        %v1138 = vpop.f32.mrb[0].mxu0
        %1139 = vmatprep.mubr.f32.mxu0 0.0
        %1140 = vmatmul.mubr.f32.gmra.mrb[0].mxu0 %v974
        %v1141 = vpop.f32.mrb[0].mxu0
        %v1142 = vadd.f32 0.0, %v1141
        %v1143 = vpop.f32.mrb[0].mxu0
        %1144 = vmatprep.mubr.f32.mxu0 0.0
        %1145 = vmatmul.mubr.f32.gmra.mrb[0].mxu0 %v977
        %v1146 = vpop.f32.mrb[0].mxu0
        %v1147 = vadd.f32 0.0, %v1146
        %v1148 = vpop.f32.mrb[0].mxu0
        %1149 = vmatprep.mubr.f32.mxu0 0.0
        %1150 = vmatmul.mubr.f32.gmra.mrb[0].mxu0 %v980
        %v1151 = vpop.f32.mrb[0].mxu0
        %v1152 = vadd.f32 0.0, %v1151
        %v1153 = vpop.f32.mrb[0].mxu0
        %1154 = vmatprep.mubr.f32.mxu0 0.0
        %1155 = vmatmul.mubr.f32.gmra.mrb[0].mxu0 %v983
        %v1156 = vpop.f32.mrb[0].mxu0
        %v1157 = vadd.f32 0.0, %v1156
        %v1158 = vpop.f32.mrb[0].mxu0
        %1159 = vmatprep.mubr.f32.mxu0 0.0
        %1160 = vmatmul.mubr.f32.gmra.mrb[0].mxu0 %v986
        %v1161 = vpop.f32.mrb[0].mxu0
        %v1162 = vadd.f32 0.0, %v1161
        %v1163 = vpop.f32.mrb[0].mxu0
        %1164 = vmatprep.mubr.f32.mxu0 0.0
        %1165 = vmatmul.mubr.f32.gmra.mrb[0].mxu0 %v989
        %v1166 = vpop.f32.mrb[0].mxu0
        %v1167 = vadd.f32 0.0, %v1166
        %v1168 = vpop.f32.mrb[0].mxu0
        %1169 = vmatprep.mubr.f32.mxu0 0.0
        %1170 = vmatmul.mubr.f32.gmra.mrb[0].mxu0 %v992
        %v1171 = vpop.f32.mrb[0].mxu0
        %v1172 = vadd.f32 0.0, %v1171
        %v1173 = vpop.f32.mrb[0].mxu0
        %1174 = vmatprep.mubr.f32.mxu0 0.0
        %1175 = vmatmul.mubr.f32.gmra.mrb[0].mxu0 %v995
        %v1176 = vpop.f32.mrb[0].mxu0
        %v1177 = vadd.f32 0.0, %v1176
        %v1178 = vpop.f32.mrb[0].mxu0
        %1179 = vmatprep.mubr.f32.mxu0 0.0
        %1180 = vmatmul.mubr.f32.gmra.mrb[0].mxu0 %v998
        %v1181 = vpop.f32.mrb[0].mxu0
        %v1182 = vadd.f32 0.0, %v1181
        %v1183 = vpop.f32.mrb[0].mxu0
        %1184 = vmatprep.mubr.f32.mxu0 0.0
        %1185 = vmatmul.mubr.f32.gmra.mrb[0].mxu0 %v1001
        %v1186 = vpop.f32.mrb[0].mxu0
        %v1187 = vadd.f32 0.0, %v1186
        %v1188 = vpop.f32.mrb[0].mxu0
        %1189 = vmatprep.mubr.f32.mxu0 0.0
        %1190 = vmatmul.mubr.f32.gmra.mrb[0].mxu0 %v1004
        %v1191 = vpop.f32.mrb[0].mxu0
        %v1192 = vadd.f32 0.0, %v1191
        %v1193 = vpop.f32.mrb[0].mxu0
        %1194 = vmatprep.mubr.f32.mxu0 0.0
        %1195 = vmatmul.mubr.f32.gmra.mrb[0].mxu0 %v1007
        %v1196 = vpop.f32.mrb[0].mxu0
        %v1197 = vadd.f32 0.0, %v1196
        %v1198 = vpop.f32.mrb[0].mxu0
        %1199 = vmatprep.mubr.f32.mxu0 0.0
        %1200 = vmatmul.mubr.f32.gmra.mrb[0].mxu0 %v1010
        %v1201 = vpop.f32.mrb[0].mxu0
        %v1202 = vadd.f32 0.0, %v1201
        %v1203 = vpop.f32.mrb[0].mxu0
        %1204 = vdwg.mxu0
        %v1205 = vmul.f32 %v1127, 0.125
        %v1206 = vmul.f32 %v1132, 0.125
        %v1207 = vmul.f32 %v1137, 0.125
        %v1208 = vmul.f32 %v1142, 0.125
        %v1209 = vmul.f32 %v1147, 0.125
        %v1210 = vmul.f32 %v1152, 0.125
        %v1211 = vmul.f32 %v1157, 0.125
        %v1212 = vmul.f32 %v1162, 0.125
        %v1213 = vmul.f32 %v1167, 0.125
        %v1214 = vmul.f32 %v1172, 0.125
        %v1215 = vmul.f32 %v1177, 0.125
        %v1216 = vmul.f32 %v1182, 0.125
        %v1217 = vmul.f32 %v1187, 0.125
        %v1218 = vmul.f32 %v1192, 0.125
        %v1219 = vmul.f32 %v1197, 0.125
        %v1220 = vmul.f32 %v1202, 0.125
        %1221 = vmax.xlane.f32.xlu0 %v1205
        %v1222 = vpop.xlane.xlu0 %1221
        %1223 = vmax.xlane.f32.xlu0 %v1206
        %v1224 = vpop.xlane.xlu0 %1223
        %1225 = vmax.xlane.f32.xlu0 %v1207
        %v1226 = vpop.xlane.xlu0 %1225
        %1227 = vmax.xlane.f32.xlu0 %v1208
        %v1228 = vpop.xlane.xlu0 %1227
        %1229 = vmax.xlane.f32.xlu0 %v1209
        %v1230 = vpop.xlane.xlu0 %1229
        %1231 = vmax.xlane.f32.xlu0 %v1210
        %v1232 = vpop.xlane.xlu0 %1231
        %1233 = vmax.xlane.f32.xlu0 %v1211
        %v1234 = vpop.xlane.xlu0 %1233
        %1235 = vmax.xlane.f32.xlu0 %v1212
        %v1236 = vpop.xlane.xlu0 %1235
        %1237 = vmax.xlane.f32.xlu0 %v1213
        %v1238 = vpop.xlane.xlu0 %1237
        %1239 = vmax.xlane.f32.xlu0 %v1214
        %v1240 = vpop.xlane.xlu0 %1239
        %1241 = vmax.xlane.f32.xlu0 %v1215
        %v1242 = vpop.xlane.xlu0 %1241
        %1243 = vmax.xlane.f32.xlu0 %v1216
        %v1244 = vpop.xlane.xlu0 %1243
        %1245 = vmax.xlane.f32.xlu0 %v1217
        %v1246 = vpop.xlane.xlu0 %1245
        %1247 = vmax.xlane.f32.xlu0 %v1218
        %v1248 = vpop.xlane.xlu0 %1247
        %1249 = vmax.xlane.f32.xlu0 %v1219
        %v1250 = vpop.xlane.xlu0 %1249
        %1251 = vmax.xlane.f32.xlu0 %v1220
        %v1252 = vpop.xlane.xlu0 %1251
        %v1253 = vsub.f32 %v1205, %v1222
        %v1254 = vsub.f32 %v1206, %v1224
        %v1255 = vsub.f32 %v1207, %v1226
        %v1256 = vsub.f32 %v1208, %v1228
        %v1257 = vsub.f32 %v1209, %v1230
        %v1258 = vsub.f32 %v1210, %v1232
        %v1259 = vsub.f32 %v1211, %v1234
        %v1260 = vsub.f32 %v1212, %v1236
        %v1261 = vsub.f32 %v1213, %v1238
        %v1262 = vsub.f32 %v1214, %v1240
        %v1263 = vsub.f32 %v1215, %v1242
        %v1264 = vsub.f32 %v1216, %v1244
        %v1265 = vsub.f32 %v1217, %v1246
        %v1266 = vsub.f32 %v1218, %v1248
        %v1267 = vsub.f32 %v1219, %v1250
        %v1268 = vsub.f32 %v1220, %v1252
        %v1269 = vmul.f32 %v1253, 1.442695
        %v1270 = vpow.pop %v1269
        %v1271 = vmul.f32 %v1254, 1.442695
        %v1272 = vpow.pop %v1271
        %v1273 = vmul.f32 %v1255, 1.442695
        %v1274 = vpow.pop %v1273
        %v1275 = vmul.f32 %v1256, 1.442695
        %v1276 = vpow.pop %v1275
        %v1277 = vmul.f32 %v1257, 1.442695
        %v1278 = vpow.pop %v1277
        %v1279 = vmul.f32 %v1258, 1.442695
        %v1280 = vpow.pop %v1279
        %v1281 = vmul.f32 %v1259, 1.442695
        %v1282 = vpow.pop %v1281
        %v1283 = vmul.f32 %v1260, 1.442695
        %v1284 = vpow.pop %v1283
        %v1285 = vmul.f32 %v1261, 1.442695
        %v1286 = vpow.pop %v1285
        %v1287 = vmul.f32 %v1262, 1.442695
        %v1288 = vpow.pop %v1287
        %v1289 = vmul.f32 %v1263, 1.442695
        %v1290 = vpow.pop %v1289
        %v1291 = vmul.f32 %v1264, 1.442695
        %v1292 = vpow.pop %v1291
        %v1293 = vmul.f32 %v1265, 1.442695
        %v1294 = vpow.pop %v1293
        %v1295 = vmul.f32 %v1266, 1.442695
        %v1296 = vpow.pop %v1295
        %v1297 = vmul.f32 %v1267, 1.442695
        %v1298 = vpow.pop %v1297
        %v1299 = vmul.f32 %v1268, 1.442695
        %v1300 = vpow.pop %v1299
        %1301 = vadd.xlane.f32.xlu0 %v1270
        %v1302 = vpop.xlane.xlu0 %1301
        %1303 = vadd.xlane.f32.xlu0 %v1272
        %v1304 = vpop.xlane.xlu0 %1303
        %1305 = vadd.xlane.f32.xlu0 %v1274
        %v1306 = vpop.xlane.xlu0 %1305
        %1307 = vadd.xlane.f32.xlu0 %v1276
        %v1308 = vpop.xlane.xlu0 %1307
        %1309 = vadd.xlane.f32.xlu0 %v1278
        %v1310 = vpop.xlane.xlu0 %1309
        %1311 = vadd.xlane.f32.xlu0 %v1280
        %v1312 = vpop.xlane.xlu0 %1311
        %1313 = vadd.xlane.f32.xlu0 %v1282
        %v1314 = vpop.xlane.xlu0 %1313
        %1315 = vadd.xlane.f32.xlu0 %v1284
        %v1316 = vpop.xlane.xlu0 %1315
        %1317 = vadd.xlane.f32.xlu0 %v1286
        %v1318 = vpop.xlane.xlu0 %1317
        %1319 = vadd.xlane.f32.xlu0 %v1288
        %v1320 = vpop.xlane.xlu0 %1319
        %1321 = vadd.xlane.f32.xlu0 %v1290
        %v1322 = vpop.xlane.xlu0 %1321
        %1323 = vadd.xlane.f32.xlu0 %v1292
        %v1324 = vpop.xlane.xlu0 %1323
        %1325 = vadd.xlane.f32.xlu0 %v1294
        %v1326 = vpop.xlane.xlu0 %1325
        %1327 = vadd.xlane.f32.xlu0 %v1296
        %v1328 = vpop.xlane.xlu0 %1327
        %1329 = vadd.xlane.f32.xlu0 %v1298
        %v1330 = vpop.xlane.xlu0 %1329
        %1331 = vadd.xlane.f32.xlu0 %v1300
        %v1332 = vpop.xlane.xlu0 %1331
        %1333 = vmatprep.subr.mxu0 %v871
        %1334 = vmatpush1.msra.mxu0 %v869
        %1335 = vmatprep.subr.mxu0 %v877
        %1336 = vmatpush1.msra.mxu0 %v875
        %1337 = vmatprep.subr.mxu0 %v883
        %1338 = vmatpush1.msra.mxu0 %v881
        %1339 = vmatprep.subr.mxu0 %v889
        %1340 = vmatpush1.msra.mxu0 %v887
        %1341 = vmatprep.subr.mxu0 %v895
        %1342 = vmatpush1.msra.mxu0 %v893
        %1343 = vmatprep.subr.mxu0 %v901
        %1344 = vmatpush1.msra.mxu0 %v899
        %1345 = vmatprep.subr.mxu0 %v907
        %1346 = vmatpush1.msra.mxu0 %v905
        %1347 = vmatprep.subr.mxu0 %v913
        %1348 = vmatpush1.msra.mxu0 %v911
        %1349 = vmatprep.subr.mxu0 %v919
        %1350 = vmatpush1.msra.mxu0 %v917
        %1351 = vmatprep.subr.mxu0 %v925
        %1352 = vmatpush1.msra.mxu0 %v923
        %1353 = vmatprep.subr.mxu0 %v931
        %1354 = vmatpush1.msra.mxu0 %v929
        %1355 = vmatprep.subr.mxu0 %v937
        %1356 = vmatpush1.msra.mxu0 %v935
        %1357 = vmatprep.subr.mxu0 %v943
        %1358 = vmatpush1.msra.mxu0 %v941
        %1359 = vmatprep.subr.mxu0 %v949
        %1360 = vmatpush1.msra.mxu0 %v947
        %1361 = vmatprep.subr.mxu0 %v955
        %1362 = vmatpush1.msra.mxu0 %v953
        %1363 = vmatprep.subr.mxu0 %v961
        %1364 = vmatpush1.msra.mxu0 %v959
        %1365 = vmatprep.subr.mxu0 0.0
        %1366 = vmatpush1.msra.mxu0 0.0
        %1367 = vmatprep.subr.mxu0 0.0
        %1368 = vmatpush1.msra.mxu0 0.0
        %1369 = vmatprep.subr.mxu0 0.0
        %1370 = vmatpush1.msra.mxu0 0.0
        %1371 = vmatprep.subr.mxu0 0.0
        %1372 = vmatpush1.msra.mxu0 0.0
        %1373 = vmatprep.subr.mxu0 0.0
        %1374 = vmatpush1.msra.mxu0 0.0
        %1375 = vmatprep.subr.mxu0 0.0
        %1376 = vmatpush1.msra.mxu0 0.0
        %1377 = vmatprep.subr.mxu0 0.0
        %1378 = vmatpush1.msra.mxu0 0.0
        %1379 = vmatprep.subr.mxu0 0.0
        %1380 = vmatpush1.msra.mxu0 0.0
        %1381 = vmatprep.subr.mxu0 0.0
        %1382 = vmatpush1.msra.mxu0 0.0
        %1383 = vmatprep.subr.mxu0 0.0
        %1384 = vmatpush1.msra.mxu0 0.0
        %1385 = vmatprep.subr.mxu0 0.0
        %1386 = vmatpush1.msra.mxu0 0.0
        %1387 = vmatprep.subr.mxu0 0.0
        %1388 = vmatpush1.msra.mxu0 0.0
        %1389 = vmatprep.subr.mxu0 0.0
        %1390 = vmatpush1.msra.mxu0 0.0
        %1391 = vmatprep.subr.mxu0 0.0
        %1392 = vmatpush1.msra.mxu0 0.0
        %1393 = vmatprep.subr.mxu0 0.0
        %1394 = vmatpush1.msra.mxu0 0.0
        %1395 = vmatprep.subr.mxu0 0.0
        %1396 = vmatpush1.msra.mxu0 0.0
        %1397 = vmatprep.mubr.f32.mxu0 0.0
        %1398 = vmatmul.mubr.f32.gmra.mrb[0].mxu0 %v1270
        %v1399 = vpop.f32.mrb[0].mxu0
        %v1400 = vadd.f32 0.0, %v1399
        %v1401 = vpop.f32.mrb[0].mxu0
        %v1402 = vadd.f32 0.0, %v1401
        %1403 = vmatprep.mubr.f32.mxu0 0.0
        %1404 = vmatmul.mubr.f32.gmra.mrb[0].mxu0 %v1272
        %v1405 = vpop.f32.mrb[0].mxu0
        %v1406 = vadd.f32 0.0, %v1405
        %v1407 = vpop.f32.mrb[0].mxu0
        %v1408 = vadd.f32 0.0, %v1407
        %1409 = vmatprep.mubr.f32.mxu0 0.0
        %1410 = vmatmul.mubr.f32.gmra.mrb[0].mxu0 %v1274
        %v1411 = vpop.f32.mrb[0].mxu0
        %v1412 = vadd.f32 0.0, %v1411
        %v1413 = vpop.f32.mrb[0].mxu0
        %v1414 = vadd.f32 0.0, %v1413
        %1415 = vmatprep.mubr.f32.mxu0 0.0
        %1416 = vmatmul.mubr.f32.gmra.mrb[0].mxu0 %v1276
        %v1417 = vpop.f32.mrb[0].mxu0
        %v1418 = vadd.f32 0.0, %v1417
        %v1419 = vpop.f32.mrb[0].mxu0
        %v1420 = vadd.f32 0.0, %v1419
        %1421 = vmatprep.mubr.f32.mxu0 0.0
        %1422 = vmatmul.mubr.f32.gmra.mrb[0].mxu0 %v1278
        %v1423 = vpop.f32.mrb[0].mxu0
        %v1424 = vadd.f32 0.0, %v1423
        %v1425 = vpop.f32.mrb[0].mxu0
        %v1426 = vadd.f32 0.0, %v1425
        %1427 = vmatprep.mubr.f32.mxu0 0.0
        %1428 = vmatmul.mubr.f32.gmra.mrb[0].mxu0 %v1280
        %v1429 = vpop.f32.mrb[0].mxu0
        %v1430 = vadd.f32 0.0, %v1429
        %v1431 = vpop.f32.mrb[0].mxu0
        %v1432 = vadd.f32 0.0, %v1431
        %1433 = vmatprep.mubr.f32.mxu0 0.0
        %1434 = vmatmul.mubr.f32.gmra.mrb[0].mxu0 %v1282
        %v1435 = vpop.f32.mrb[0].mxu0
        %v1436 = vadd.f32 0.0, %v1435
        %v1437 = vpop.f32.mrb[0].mxu0
        %v1438 = vadd.f32 0.0, %v1437
        %1439 = vmatprep.mubr.f32.mxu0 0.0
        %1440 = vmatmul.mubr.f32.gmra.mrb[0].mxu0 %v1284
        %v1441 = vpop.f32.mrb[0].mxu0
        %v1442 = vadd.f32 0.0, %v1441
        %v1443 = vpop.f32.mrb[0].mxu0
        %v1444 = vadd.f32 0.0, %v1443
        %1445 = vmatprep.mubr.f32.mxu0 0.0
        %1446 = vmatmul.mubr.f32.gmra.mrb[0].mxu0 %v1286
        %v1447 = vpop.f32.mrb[0].mxu0
        %v1448 = vadd.f32 0.0, %v1447
        %v1449 = vpop.f32.mrb[0].mxu0
        %v1450 = vadd.f32 0.0, %v1449
        %1451 = vmatprep.mubr.f32.mxu0 0.0
        %1452 = vmatmul.mubr.f32.gmra.mrb[0].mxu0 %v1288
        %v1453 = vpop.f32.mrb[0].mxu0
        %v1454 = vadd.f32 0.0, %v1453
        %v1455 = vpop.f32.mrb[0].mxu0
        %v1456 = vadd.f32 0.0, %v1455
        %1457 = vmatprep.mubr.f32.mxu0 0.0
        %1458 = vmatmul.mubr.f32.gmra.mrb[0].mxu0 %v1290
        %v1459 = vpop.f32.mrb[0].mxu0
        %v1460 = vadd.f32 0.0, %v1459
        %v1461 = vpop.f32.mrb[0].mxu0
        %v1462 = vadd.f32 0.0, %v1461
        %1463 = vmatprep.mubr.f32.mxu0 0.0
        %1464 = vmatmul.mubr.f32.gmra.mrb[0].mxu0 %v1292
        %v1465 = vpop.f32.mrb[0].mxu0
        %v1466 = vadd.f32 0.0, %v1465
        %v1467 = vpop.f32.mrb[0].mxu0
        %v1468 = vadd.f32 0.0, %v1467
        %1469 = vmatprep.mubr.f32.mxu0 0.0
        %1470 = vmatmul.mubr.f32.gmra.mrb[0].mxu0 %v1294
        %v1471 = vpop.f32.mrb[0].mxu0
        %v1472 = vadd.f32 0.0, %v1471
        %v1473 = vpop.f32.mrb[0].mxu0
        %v1474 = vadd.f32 0.0, %v1473
        %1475 = vmatprep.mubr.f32.mxu0 0.0
        %1476 = vmatmul.mubr.f32.gmra.mrb[0].mxu0 %v1296
        %v1477 = vpop.f32.mrb[0].mxu0
        %v1478 = vadd.f32 0.0, %v1477
        %v1479 = vpop.f32.mrb[0].mxu0
        %v1480 = vadd.f32 0.0, %v1479
        %1481 = vmatprep.mubr.f32.mxu0 0.0
        %1482 = vmatmul.mubr.f32.gmra.mrb[0].mxu0 %v1298
        %v1483 = vpop.f32.mrb[0].mxu0
        %v1484 = vadd.f32 0.0, %v1483
        %v1485 = vpop.f32.mrb[0].mxu0
        %v1486 = vadd.f32 0.0, %v1485
        %1487 = vmatprep.mubr.f32.mxu0 0.0
        %1488 = vmatmul.mubr.f32.gmra.mrb[0].mxu0 %v1300
        %v1489 = vpop.f32.mrb[0].mxu0
        %v1490 = vadd.f32 0.0, %v1489
        %v1491 = vpop.f32.mrb[0].mxu0
        %v1492 = vadd.f32 0.0, %v1491
        %1493 = vdwg.mxu0
        %v1494 = vrcp.pop %v1302
        %v1495 = vmul.f32 %v1400, %v1494
        %v1496 = vmul.f32 %v1402, %v1494
        %v1497 = vrcp.pop %v1304
        %v1498 = vmul.f32 %v1406, %v1497
        %v1499 = vmul.f32 %v1408, %v1497
        %v1500 = vrcp.pop %v1306
        %v1501 = vmul.f32 %v1412, %v1500
        %v1502 = vmul.f32 %v1414, %v1500
        %v1503 = vrcp.pop %v1308
        %v1504 = vmul.f32 %v1418, %v1503
        %v1505 = vmul.f32 %v1420, %v1503
        %v1506 = vrcp.pop %v1310
        %v1507 = vmul.f32 %v1424, %v1506
        %v1508 = vmul.f32 %v1426, %v1506
        %v1509 = vrcp.pop %v1312
        %v1510 = vmul.f32 %v1430, %v1509
        %v1511 = vmul.f32 %v1432, %v1509
        %v1512 = vrcp.pop %v1314
        %v1513 = vmul.f32 %v1436, %v1512
        %v1514 = vmul.f32 %v1438, %v1512
        %v1515 = vrcp.pop %v1316
        %v1516 = vmul.f32 %v1442, %v1515
        %v1517 = vmul.f32 %v1444, %v1515
        %v1518 = vrcp.pop %v1318
        %v1519 = vmul.f32 %v1448, %v1518
        %v1520 = vmul.f32 %v1450, %v1518
        %v1521 = vrcp.pop %v1320
        %v1522 = vmul.f32 %v1454, %v1521
        %v1523 = vmul.f32 %v1456, %v1521
        %v1524 = vrcp.pop %v1322
        %v1525 = vmul.f32 %v1460, %v1524
        %v1526 = vmul.f32 %v1462, %v1524
        %v1527 = vrcp.pop %v1324
        %v1528 = vmul.f32 %v1466, %v1527
        %v1529 = vmul.f32 %v1468, %v1527
        %v1530 = vrcp.pop %v1326
        %v1531 = vmul.f32 %v1472, %v1530
        %v1532 = vmul.f32 %v1474, %v1530
        %v1533 = vrcp.pop %v1328
        %v1534 = vmul.f32 %v1478, %v1533
        %v1535 = vmul.f32 %v1480, %v1533
        %v1536 = vrcp.pop %v1330
        %v1537 = vmul.f32 %v1484, %v1536
        %v1538 = vmul.f32 %v1486, %v1536
        %v1539 = vrcp.pop %v1332
        %v1540 = vmul.f32 %v1490, %v1539
        %v1541 = vmul.f32 %v1492, %v1539
        %1542 = vst [vmem:[%s378] sm:$0xff] %v1495
        %1543 = vst [vmem:[%s378 + $0x8] sm:$0xff] %v1496
        %1544 = vst [vmem:[%s378 + $0x10] sm:$0xff] %v1498
        %1545 = vst [vmem:[%s378 + $0x18] sm:$0xff] %v1499
        %1546 = vst [vmem:[%s378 + $0x20] sm:$0xff] %v1501
        %1547 = vst [vmem:[%s378 + $0x28] sm:$0xff] %v1502
        %1548 = vst [vmem:[%s378 + $0x30] sm:$0xff] %v1504
        %1549 = vst [vmem:[%s378 + $0x38] sm:$0xff] %v1505
        %1550 = vst [vmem:[%s378 + $0x40] sm:$0xff] %v1507
        %1551 = vst [vmem:[%s378 + $0x48] sm:$0xff] %v1508
        %1552 = vst [vmem:[%s378 + $0x50] sm:$0xff] %v1510
        %1553 = vst [vmem:[%s378 + $0x58] sm:$0xff] %v1511
        %1554 = vst [vmem:[%s378 + $0x60] sm:$0xff] %v1513
        %1555 = vst [vmem:[%s378 + $0x68] sm:$0xff] %v1514
        %1556 = vst [vmem:[%s378 + $0x70] sm:$0xff] %v1516
        %1557 = vst [vmem:[%s378 + $0x78] sm:$0xff] %v1517
        %1558 = vst [vmem:[%s378 + $0x80] sm:$0xff] %v1519
        %1559 = vst [vmem:[%s378 + $0x88] sm:$0xff] %v1520
        %1560 = vst [vmem:[%s378 + $0x90] sm:$0xff] %v1522
        %1561 = vst [vmem:[%s378 + $0x98] sm:$0xff] %v1523
        %1562 = vst [vmem:[%s378 + $0xa0] sm:$0xff] %v1525
        %1563 = vst [vmem:[%s378 + $0xa8] sm:$0xff] %v1526
        %1564 = vst [vmem:[%s378 + $0xb0] sm:$0xff] %v1528
        %1565 = vst [vmem:[%s378 + $0xb8] sm:$0xff] %v1529
        %1566 = vst [vmem:[%s378 + $0xc0] sm:$0xff] %v1531
        %1567 = vst [vmem:[%s378 + $0xc8] sm:$0xff] %v1532
        %1568 = vst [vmem:[%s378 + $0xd0] sm:$0xff] %v1534
        %1569 = vst [vmem:[%s378 + $0xd8] sm:$0xff] %v1535
        %1570 = vst [vmem:[%s378 + $0xe0] sm:$0xff] %v1537
        %1571 = vst [vmem:[%s378 + $0xe8] sm:$0xff] %v1538
        %1572 = vst [vmem:[%s378 + $0xf0] sm:$0xff] %v1540
        %1573 = vst [vmem:[%s378 + $0xf8] sm:$0xff] %v1541
        %s1574 = sand.u32 %s228, 1
        %s1575 = scalar_lea.sflag [#allocation4], %s1574
        %s1576 = sand.u32 %s228, 1
        %s1577 = smul.addr %s1576, 256
        %s1578 = scalar_lea.vmem [#allocation7], %s1577
        // Predicated region
        $region61: #{tpu_custom_call.1} parent=51 // pred_check
          %p1579 = pneg %p238
        $region62: #{tpu_custom_call.1} parent=51 // pred_check_branch
          %1581 = sbr.rel (%p1579) target = $region64
        $region63: #{tpu_custom_call.1} parent=51 // pred_region
          %s1582 = smul.u32 16, %s31
          %s1584 = ssub.s32 4096, 4096
          %1585 = vsyncadd %s1575, %s1584
          %s1586 = smul.addr %s1582, 2
          %s1587 = smul.addr %s30, 32
          %s1588 = sadd.s32 %s1586, %s1587
          %s1589 = smul.addr %s1588, 128
          %s1590 = scalar_lea.hbm %s8, %s1589
          %s1591 = sshll.u32 %s1578, 4
          %s1592 = int_to_ptr.vmem [resolvable:$true] %s1591
          %1597 = dma.vmem_to_hbm [thread:$0]  %s1592, 4096, %s1590, %s1575, 256, 256, 16
        $region64: #{tpu_custom_call.1} parent=51 // pred_fallthru
          _
      $region52: #{tpu_custom_call.1} parent=5 // pred_fallthru
        _
      %p1598 = scmp.le.s32.totalorder 2, %s21
      // Predicated region
      $region65: #{tpu_custom_call.1} parent=5 // pred_check
        %p1599 = pneg %p1598
      $region66: #{tpu_custom_call.1} parent=5 // pred_check_branch
        %1601 = sbr.rel (%p1599) target = $region68
      $region67: #{tpu_custom_call.1} parent=5 // pred_region
        %s1602 = ssub.s32 %s21, 2
        // Predicated region
        $region69: #{tpu_custom_call.1} parent=67 // pred_check
          %p1603 = pneg %p244
        $region70: #{tpu_custom_call.1} parent=67 // pred_check_branch
          %1605 = sbr.rel (%p1603) target = $region72
        $region71: #{tpu_custom_call.1} parent=67 // pred_region
          %s1606 = sand.u32 %s229, 1
          %s1607 = scalar_lea.sflag [#allocation4], %s1606
          %s1608 = sand.u32 %s229, 1
          %s1609 = smul.addr %s1608, 256
          %s1610 = scalar_lea.vmem [#allocation7], %s1609
          %1611 = dma.done %s1607, 4096
        $region72: #{tpu_custom_call.1} parent=67 // pred_fallthru
          _
      $region68: #{tpu_custom_call.1} parent=5 // pred_fallthru
        _
    $region6: #{tpu_custom_call.1} parent=1 // loop_footer
      %s25 = sadd.s32 1, %s21
    $region7: #{tpu_custom_call.1} parent=1 // loop_footer_branch
      %20 = sbr.rel target = $region3
    $region8: #{tpu_custom_call.1} parent=1 // loop_exit
      _
    %1612 = vsyncpa [#allocation3], 1
    %s1613 = scalar_lea.sflag [#allocation3], 1
    %1614 = vsyncpa %s1613, 1
    %1615 = vsyncpa [#allocation6], 1
    %1616 = vsyncpa [#allocation4], 1
    %s1617 = scalar_lea.sflag [#allocation4], 1
    %1618 = vsyncpa %s1617, 1

</llo_original>
